<compile_context>
chip_gen: v6e
topology: v6e:2x2x1
jax: 0.10.0
libtpu: 0.0.40
codegen_flags: <defaults>
</compile_context>

<pallas_src>
import functools
import numpy as np
import jax
import jax.numpy as jnp
from jax.experimental import pallas as pl
from jax.experimental.pallas import tpu as pltpu


def _encoder_stack_kernel(x_ref, wqkv_ref, wout_ref,
                          ln1g_ref, ln1b_ref,
                          w1_ref, b1_ref, w2_ref, b2_ref,
                          ln2g_ref, ln2b_ref,
                          o_ref, act_ref,
                          *, head_num, head_dim, scale):
    """One (Bb, T, E) activation tile through one encoder layer (grid = (B//Bb, L))."""
    l = pl.program_id(1)

    # First layer for this batch tile: bring the input activation into VMEM scratch.
    @pl.when(l == 0)
    def _():
        act_ref[...] = x_ref[...].astype(jnp.float32)

    Bb, T, E = act_ref.shape
    H, D = head_num, head_dim
    R = Bb * T

    x = act_ref[...].reshape(R, E)          # (R, E) rows; layout-trivial (T % 8 == 0)

    # ---------------- Multi-head attention (all rows / all heads batched) ----------------
    # qkv weight columns are pre-permuted to [q | k | v], each head-major '(h d)',
    # reproducing rearrange('b t (d k h) -> k b h t d').
    qkv = jnp.dot(x, wqkv_ref[0], preferred_element_type=jnp.float32)   # (R, 3E)
    q = qkv[:, 0:E] * scale       # fold the (faithful) dk = (E//H)**1/2 scale into q
    k = qkv[:, E:2 * E]
    v = qkv[:, 2 * E:3 * E]

    def split_heads(m):           # (R, E) head-major columns -> (H*Bb, T, D)
        return jnp.concatenate(
            [m[:, h * D:(h + 1) * D].reshape(Bb, T, D) for h in range(H)], axis=0)

    q3, k3, v3 = split_heads(q), split_heads(k), split_heads(v)

    energy = jnp.einsum('bid,bjd->bij', q3, k3,
                        preferred_element_type=jnp.float32)             # (H*Bb, T, T)
    energy = energy - jnp.max(energy, axis=-1, keepdims=True)
    probs = jnp.exp(energy)
    probs = probs * pl.reciprocal(jnp.sum(probs, axis=-1, keepdims=True), approx=True)
    ctx = jnp.einsum('bij,bjd->bid', probs, v3,
                     preferred_element_type=jnp.float32)                # (H*Bb, T, D)
    ctx = ctx.reshape(H, R, D)

    # Output projection: concat-free -- accumulate per-head row-blocks of W_out.
    wout = wout_ref[0]
    attn_out = jnp.dot(ctx[0], wout[0:D, :], preferred_element_type=jnp.float32)
    for h in range(1, H):
        attn_out = attn_out + jnp.dot(ctx[h], wout[h * D:(h + 1) * D, :],
                                      preferred_element_type=jnp.float32)

    # ---------------- residual + LayerNorm (one-pass stats, rsqrt) ----------------
    def layer_norm(y, g, b):
        mu = jnp.mean(y, axis=-1, keepdims=True)
        mu2 = jnp.mean(y * y, axis=-1, keepdims=True)
        var = mu2 - mu * mu
        return (y - mu) * jax.lax.rsqrt(var + 1e-5) * g + b

    x = layer_norm(x + attn_out, ln1g_ref[0], ln1b_ref[0])

    # ---------------- MLP: Linear -> GELU(erf) -> Linear ----------------
    h1 = jnp.dot(x, w1_ref[0], preferred_element_type=jnp.float32) + b1_ref[0]
    h1 = 0.5 * h1 * (1.0 + jax.lax.erf(h1 * 0.7071067811865476))
    h2 = jnp.dot(h1, w2_ref[0], preferred_element_type=jnp.float32) + b2_ref[0]

    x = layer_norm(x + h2, ln2g_ref[0], ln2b_ref[0])

    act_ref[...] = x.reshape(Bb, T, E)

    @pl.when(l == pl.num_programs(1) - 1)
    def _():
        o_ref[...] = act_ref[...].astype(o_ref.dtype)


def transformer_encoder(x, params, *, head_num, b_block=None):
    """Fused TransformerEncoder forward: one pallas_call for the whole layer stack."""
    B, T, E = x.shape
    L = len(params)
    D = E // head_num
    M = params[0]["w1_t"].shape[1]
    scale = (E // head_num) ** 1 / 2          # reproduces the PyTorch expression (== D/2)

    if b_block is None:
        b_block = B
    assert B % b_block == 0 and T % 8 == 0 and E % 128 == 0 and M % 128 == 0

    # Stack per-layer weights along a leading L axis so BlockSpec pipelining can
    # prefetch layer l+1 weights while layer l computes.
    # TODO(synk): cast weight stacks to bfloat16 for production sizes (halves HBM traffic
    # and VMEM residency; needed on v7x's 64 MiB VMEM at large E) -- kept fp32 here so the
    # numerical check against the fp32 reference stays tight.
    st = lambda name: jnp.stack([p[name] for p in params], axis=0)
    wqkv_s, wout_s = st("wqkv_t"), st("wout_t")           # (L,E,3E), (L,E,E)
    ln1g_s, ln1b_s = st("ln1_g"), st("ln1_b")             # (L,1,E)
    w1_s, b1_s = st("w1_t"), st("b1")                     # (L,E,M), (L,1,M)
    w2_s, b2_s = st("w2_t"), st("b2")                     # (L,M,E), (L,1,E)
    ln2g_s, ln2b_s = st("ln2_g"), st("ln2_b")             # (L,1,E)

    kernel = functools.partial(_encoder_stack_kernel, head_num=head_num,
                               head_dim=D, scale=float(scale))

    x_map = lambda b, l: (b, 0, 0)
    w_map = lambda b, l: (l, 0, 0)

    in_specs = [
        pl.BlockSpec((b_block, T, E), x_map),     # x
        pl.BlockSpec((1, E, 3 * E), w_map),       # wqkv
        pl.BlockSpec((1, E, E), w_map),           # wout
        pl.BlockSpec((1, 1, E), w_map),           # ln1 gamma
        pl.BlockSpec((1, 1, E), w_map),           # ln1 beta
        pl.BlockSpec((1, E, M), w_map),           # w1
        pl.BlockSpec((1, 1, M), w_map),           # b1
        pl.BlockSpec((1, M, E), w_map),           # w2
        pl.BlockSpec((1, 1, E), w_map),           # b2
        pl.BlockSpec((1, 1, E), w_map),           # ln2 gamma
        pl.BlockSpec((1, 1, E), w_map),           # ln2 beta
    ]

    return pl.pallas_call(
        kernel,
        out_shape=jax.ShapeDtypeStruct((B, T, E), x.dtype),
        grid_spec=pltpu.PrefetchScalarGridSpec(
            num_scalar_prefetch=0,
            grid=(B // b_block, L),
            in_specs=in_specs,
            out_specs=pl.BlockSpec((b_block, T, E), x_map),
            scratch_shapes=[pltpu.VMEM((b_block, T, E), jnp.float32)],
        ),
        compiler_params=pltpu.CompilerParams(
            dimension_semantics=("parallel", "arbitrary"),
            vmem_limit_bytes=32 * 1024 * 1024),
    )(x, wqkv_s, wout_s, ln1g_s, ln1b_s, w1_s, b1_s, w2_s, b2_s, ln2g_s, ln2b_s)


# --------------------------- parameter setup ---------------------------

def _qkv_permutation(E, H):
    """Column permutation so qkv is laid out [q|k|v], each head-major '(h d)',
    matching rearrange('b t (d k h) -> k b h t d')."""
    D = E // H
    perm = np.zeros(3 * E, dtype=np.int32)
    for kk in range(3):
        for hh in range(H):
            for dd in range(D):
                perm[kk * E + hh * D + dd] = dd * 3 * H + kk * H + hh
    return perm


def init_params(key, embedding_dim, head_num, mlp_dim, block_num):
    E, M = embedding_dim, mlp_dim
    perm = _qkv_permutation(E, head_num)
    params = []
    for i in range(block_num):
        k = jax.random.fold_in(key, i)
        ks = jax.random.split(k, 10)
        wqkv = jax.random.normal(ks[0], (3 * E, E), jnp.float32) * 0.02   # torch: (out,in)
        wout = jax.random.normal(ks[1], (E, E), jnp.float32) * 0.02
        w1 = jax.random.normal(ks[2], (M, E), jnp.float32) * 0.02
        w2 = jax.random.normal(ks[3], (E, M), jnp.float32) * 0.02
        params.append(dict(
            wqkv_t=jnp.asarray(wqkv.T)[:, perm],          # (E, 3E), permuted cols
            wout_t=jnp.asarray(wout.T),                    # (E, E)
            ln1_g=1.0 + 0.05 * jax.random.normal(ks[4], (1, E), jnp.float32),
            ln1_b=0.05 * jax.random.normal(ks[5], (1, E), jnp.float32),
            w1_t=jnp.asarray(w1.T),                        # (E, M)
            b1=0.02 * jax.random.normal(ks[6], (1, M), jnp.float32),
            w2_t=jnp.asarray(w2.T),                        # (M, E)
            b2=0.02 * jax.random.normal(ks[7], (1, E), jnp.float32),
            ln2_g=1.0 + 0.05 * jax.random.normal(ks[8], (1, E), jnp.float32),
            ln2_b=0.05 * jax.random.normal(ks[9], (1, E), jnp.float32),
        ))
    return params


# --------------------------- pure-JAX reference ---------------------------

def _block_ref(x, p, head_num):
    B, T, E = x.shape
    D = E // head_num
    scale = (E // head_num) ** 1 / 2
    qkv = x @ p["wqkv_t"]
    q, k, v = qkv[..., :E], qkv[..., E:2 * E], qkv[..., 2 * E:]

    def split_heads(t):  # (B,T,E) -> (B,H,T,D)
        return t.reshape(B, T, head_num, D).transpose(0, 2, 1, 3)

    q, k, v = split_heads(q), split_heads(k), split_heads(v)
    energy = jnp.einsum('bhid,bhjd->bhij', q, k) * scale
    attn = jax.nn.softmax(energy, axis=-1)
    ctx = jnp.einsum('bhij,bhjd->bhid', attn, v)
    ctx = ctx.transpose(0, 2, 1, 3).reshape(B, T, E)
    x = x + ctx @ p["wout_t"]
    mu = x.mean(-1, keepdims=True); var = ((x - mu) ** 2).mean(-1, keepdims=True)
    x = (x - mu) / jnp.sqrt(var + 1e-5) * p["ln1_g"][0] + p["ln1_b"][0]
    h1 = x @ p["w1_t"] + p["b1"][0]
    h1 = 0.5 * h1 * (1.0 + jax.lax.erf(h1 / jnp.sqrt(2.0)))
    x = x + (h1 @ p["w2_t"] + p["b2"][0])
    mu = x.mean(-1, keepdims=True); var = ((x - mu) ** 2).mean(-1, keepdims=True)
    return (x - mu) / jnp.sqrt(var + 1e-5) * p["ln2_g"][0] + p["ln2_b"][0]


def transformer_encoder_ref(x, params, head_num):
    for p in params:
        x = _block_ref(x, p, head_num)
    return x


# --------------------------- main ---------------------------

if __name__ == "__main__":
    # Small but lane-dense config: E and M multiples of 128, T multiple of 8.
    B, T, E = 2, 16, 128
    head_num, mlp_dim, block_num = 2, 256, 2

    key = jax.random.PRNGKey(0)
    kx, kp = jax.random.split(key)
    x = jax.random.normal(kx, (B, T, E), jnp.float32)
    params = init_params(kp, E, head_num, mlp_dim, block_num)

    out = transformer_encoder(x, params, head_num=head_num)
    out = jax.block_until_ready(out)

    ref = transformer_encoder_ref(x, params, head_num)
    assert out.shape == (B, T, E)
    # Tolerance loosened vs. fp32-exact because the kernel uses approx reciprocal for the
    # softmax denominator, rsqrt + one-pass variance for LayerNorm (per perf feedback).
    np.testing.assert_allclose(np.asarray(out), np.asarray(ref), atol=5e-3, rtol=5e-3)

    print("KERNEL_OK")
</pallas_src>

<mosaic_0001>
module attributes {stable_mosaic.version = 11 : i64} {
  func.func @_encoder_stack_kernel(%arg0: i32, %arg1: i32, %arg2: memref<2x16x128xf32, #tpu.memory_space<vmem>>, %arg3: memref<1x128x384xf32, #tpu.memory_space<vmem>>, %arg4: memref<1x128x128xf32, #tpu.memory_space<vmem>>, %arg5: memref<1x1x128xf32, #tpu.memory_space<vmem>>, %arg6: memref<1x1x128xf32, #tpu.memory_space<vmem>>, %arg7: memref<1x128x256xf32, #tpu.memory_space<vmem>>, %arg8: memref<1x1x256xf32, #tpu.memory_space<vmem>>, %arg9: memref<1x256x128xf32, #tpu.memory_space<vmem>>, %arg10: memref<1x1x128xf32, #tpu.memory_space<vmem>>, %arg11: memref<1x1x128xf32, #tpu.memory_space<vmem>>, %arg12: memref<1x1x128xf32, #tpu.memory_space<vmem>>, %arg13: memref<2x16x128xf32, #tpu.memory_space<vmem>>, %arg14: memref<2x16x128xf32, #tpu.memory_space<vmem>>) attributes {dimension_semantics = [#tpu.dimension_semantics<parallel>, #tpu.dimension_semantics<arbitrary>], iteration_bounds = array<i64: 1, 2>, scalar_prefetch = 0 : i64, scratch_operands = 1 : i64, tpu.core_type = #tpu.core_type<tc>, window_params = [{transform_indices = @transform_0, window_bounds = array<i64: 2, 16, 128>}, {transform_indices = @transform_1, window_bounds = array<i64: 1, 128, 384>}, {transform_indices = @transform_2, window_bounds = array<i64: 1, 128, 128>}, {transform_indices = @transform_3, window_bounds = array<i64: 1, 1, 128>}, {transform_indices = @transform_4, window_bounds = array<i64: 1, 1, 128>}, {transform_indices = @transform_5, window_bounds = array<i64: 1, 128, 256>}, {transform_indices = @transform_6, window_bounds = array<i64: 1, 1, 256>}, {transform_indices = @transform_7, window_bounds = array<i64: 1, 256, 128>}, {transform_indices = @transform_8, window_bounds = array<i64: 1, 1, 128>}, {transform_indices = @transform_9, window_bounds = array<i64: 1, 1, 128>}, {transform_indices = @transform_10, window_bounds = array<i64: 1, 1, 128>}, {transform_indices = @transform_11, window_bounds = array<i64: 2, 16, 128>}]} {
    %c0_i32 = arith.constant 0 : i32
    %0 = arith.cmpi eq, %arg1, %c0_i32 : i32
    %1 = arith.extui %0 : i1 to i32
    %c0_i32_0 = arith.constant 0 : i32
    %2 = arith.cmpi ne, %1, %c0_i32_0 : i32
    scf.if %2 {
      %c0_59 = arith.constant 0 : index
      %c0_60 = arith.constant 0 : index
      %c0_61 = arith.constant 0 : index
      %133 = vector.load %arg2[%c0_59, %c0_60, %c0_61] : memref<2x16x128xf32, #tpu.memory_space<vmem>>, vector<2x16x128xf32>
      %c0_62 = arith.constant 0 : index
      %c0_63 = arith.constant 0 : index
      %c0_64 = arith.constant 0 : index
      %134 = vector.load %arg14[%c0_62, %c0_63, %c0_64] : memref<2x16x128xf32, #tpu.memory_space<vmem>>, vector<2x16x128xf32>
      tpu.vector_store %arg14[%c0_62, %c0_63, %c0_64], %133 {strides = array<i32>} : memref<2x16x128xf32, #tpu.memory_space<vmem>>, vector<2x16x128xf32>,
    } else {
    }
    %c0 = arith.constant 0 : index
    %c0_1 = arith.constant 0 : index
    %c0_2 = arith.constant 0 : index
    %3 = vector.load %arg14[%c0, %c0_1, %c0_2] : memref<2x16x128xf32, #tpu.memory_space<vmem>>, vector<2x16x128xf32>
    %4 = vector.shape_cast %3 : vector<2x16x128xf32> to vector<32x128xf32>
    %c0_3 = arith.constant 0 : index
    %c0_4 = arith.constant 0 : index
    %c0_5 = arith.constant 0 : index
    %5 = vector.load %arg3[%c0_3, %c0_4, %c0_5] : memref<1x128x384xf32, #tpu.memory_space<vmem>>, vector<1x128x384xf32>
    %6 = vector.shape_cast %5 : vector<1x128x384xf32> to vector<128x384xf32>
    %cst = arith.constant dense<0.000000e+00> : vector<32x384xf32>
    %7 = tpu.matmul %4, %6, %cst {dimension_numbers = #tpu.dot_dimension_numbers<[1], [0], [0], [1], [0, 0, 1, 1], [], []>} : vector<32x128xf32>, vector<128x384xf32>, vector<32x384xf32> -> vector<32x384xf32>
    %8 = vector.extract_strided_slice %7 {offsets = [0, 0], sizes = [32, 128], strides = [1, 1]} : vector<32x384xf32> to vector<32x128xf32>
    %cst_6 = arith.constant 3.200000e+01 : f32
    %9 = vector.broadcast %cst_6 : f32 to vector<32x128xf32>
    %10 = arith.mulf %8, %9 : vector<32x128xf32>
    %11 = vector.extract_strided_slice %7 {offsets = [0, 128], sizes = [32, 128], strides = [1, 1]} : vector<32x384xf32> to vector<32x128xf32>
    %12 = vector.extract_strided_slice %7 {offsets = [0, 256], sizes = [32, 128], strides = [1, 1]} : vector<32x384xf32> to vector<32x128xf32>
    %13 = vector.extract_strided_slice %10 {offsets = [0, 0], sizes = [32, 64], strides = [1, 1]} : vector<32x128xf32> to vector<32x64xf32>
    %14 = vector.shape_cast %13 : vector<32x64xf32> to vector<2x16x64xf32>
    %15 = vector.extract_strided_slice %10 {offsets = [0, 64], sizes = [32, 64], strides = [1, 1]} : vector<32x128xf32> to vector<32x64xf32>
    %16 = vector.shape_cast %15 : vector<32x64xf32> to vector<2x16x64xf32>
    %17 = tpu.concatenate %14, %16 in 0 : vector<2x16x64xf32>, vector<2x16x64xf32> -> vector<4x16x64xf32>
    %18 = vector.extract_strided_slice %11 {offsets = [0, 0], sizes = [32, 64], strides = [1, 1]} : vector<32x128xf32> to vector<32x64xf32>
    %19 = vector.shape_cast %18 : vector<32x64xf32> to vector<2x16x64xf32>
    %20 = vector.extract_strided_slice %11 {offsets = [0, 64], sizes = [32, 64], strides = [1, 1]} : vector<32x128xf32> to vector<32x64xf32>
    %21 = vector.shape_cast %20 : vector<32x64xf32> to vector<2x16x64xf32>
    %22 = tpu.concatenate %19, %21 in 0 : vector<2x16x64xf32>, vector<2x16x64xf32> -> vector<4x16x64xf32>
    %23 = vector.extract_strided_slice %12 {offsets = [0, 0], sizes = [32, 64], strides = [1, 1]} : vector<32x128xf32> to vector<32x64xf32>
    %24 = vector.shape_cast %23 : vector<32x64xf32> to vector<2x16x64xf32>
    %25 = vector.extract_strided_slice %12 {offsets = [0, 64], sizes = [32, 64], strides = [1, 1]} : vector<32x128xf32> to vector<32x64xf32>
    %26 = vector.shape_cast %25 : vector<32x64xf32> to vector<2x16x64xf32>
    %27 = tpu.concatenate %24, %26 in 0 : vector<2x16x64xf32>, vector<2x16x64xf32> -> vector<4x16x64xf32>
    "tpu.trace_start"() <{level = 10 : i32, message = "bid,bjd->bij"}> : () -> ()
    %cst_7 = arith.constant dense<0.000000e+00> : vector<4x16x16xf32>
    %28 = tpu.matmul %17, %22, %cst_7 {dimension_numbers = #tpu.dot_dimension_numbers<[2], [2], [1], [1], [0, 0, 0, 1, 1, 1], [0], [0]>} : vector<4x16x64xf32>, vector<4x16x64xf32>, vector<4x16x16xf32> -> vector<4x16x16xf32>
    "tpu.trace_stop"() : () -> ()
    %cst_8 = arith.constant dense<0xFF800000> : vector<4x16xf32>
    %29 = vector.multi_reduction <maximumf>, %28, %cst_8 [2] : vector<4x16x16xf32> to vector<4x16xf32>
    %30 = vector.shape_cast %29 : vector<4x16xf32> to vector<4x16x1xf32>
    %31 = vector.broadcast %30 : vector<4x16x1xf32> to vector<4x16x16xf32>
    %32 = arith.subf %28, %31 : vector<4x16x16xf32>
    %33 = math.exp %32 : vector<4x16x16xf32>
    %cst_9 = arith.constant dense<0.000000e+00> : vector<4x16xf32>
    %34 = vector.multi_reduction <add>, %33, %cst_9 [2] : vector<4x16x16xf32> to vector<4x16xf32>
    %35 = vector.shape_cast %34 : vector<4x16xf32> to vector<4x16x1xf32>
    %36 = tpu.reciprocal %35 {approx = true} : vector<4x16x1xf32> -> vector<4x16x1xf32>
    %37 = vector.broadcast %36 : vector<4x16x1xf32> to vector<4x16x16xf32>
    %38 = arith.mulf %33, %37 : vector<4x16x16xf32>
    "tpu.trace_start"() <{level = 10 : i32, message = "bij,bjd->bid"}> : () -> ()
    %cst_10 = arith.constant dense<0.000000e+00> : vector<4x16x64xf32>
    %39 = tpu.matmul %38, %27, %cst_10 {dimension_numbers = #tpu.dot_dimension_numbers<[2], [1], [1], [2], [0, 0, 0, 1, 1, 2], [0], [0]>} : vector<4x16x16xf32>, vector<4x16x64xf32>, vector<4x16x64xf32> -> vector<4x16x64xf32>
    "tpu.trace_stop"() : () -> ()
    %40 = vector.shape_cast %39 : vector<4x16x64xf32> to vector<2x32x64xf32>
    %c0_11 = arith.constant 0 : index
    %c0_12 = arith.constant 0 : index
    %c0_13 = arith.constant 0 : index
    %41 = vector.load %arg4[%c0_11, %c0_12, %c0_13] : memref<1x128x128xf32, #tpu.memory_space<vmem>>, vector<1x128x128xf32>
    %42 = vector.shape_cast %41 : vector<1x128x128xf32> to vector<128x128xf32>
    %43 = vector.extract_strided_slice %40 {offsets = [0, 0, 0], sizes = [1, 32, 64], strides = [1, 1, 1]} : vector<2x32x64xf32> to vector<1x32x64xf32>
    %44 = vector.shape_cast %43 : vector<1x32x64xf32> to vector<32x64xf32>
    %45 = vector.extract_strided_slice %42 {offsets = [0, 0], sizes = [64, 128], strides = [1, 1]} : vector<128x128xf32> to vector<64x128xf32>
    %cst_14 = arith.constant dense<0.000000e+00> : vector<32x128xf32>
    %46 = tpu.matmul %44, %45, %cst_14 {dimension_numbers = #tpu.dot_dimension_numbers<[1], [0], [0], [1], [0, 0, 1, 1], [], []>} : vector<32x64xf32>, vector<64x128xf32>, vector<32x128xf32> -> vector<32x128xf32>
    %47 = vector.extract_strided_slice %40 {offsets = [1, 0, 0], sizes = [1, 32, 64], strides = [1, 1, 1]} : vector<2x32x64xf32> to vector<1x32x64xf32>
    %48 = vector.shape_cast %47 : vector<1x32x64xf32> to vector<32x64xf32>
    %49 = vector.extract_strided_slice %42 {offsets = [64, 0], sizes = [64, 128], strides = [1, 1]} : vector<128x128xf32> to vector<64x128xf32>
    %cst_15 = arith.constant dense<0.000000e+00> : vector<32x128xf32>
    %50 = tpu.matmul %48, %49, %cst_15 {dimension_numbers = #tpu.dot_dimension_numbers<[1], [0], [0], [1], [0, 0, 1, 1], [], []>} : vector<32x64xf32>, vector<64x128xf32>, vector<32x128xf32> -> vector<32x128xf32>
    %51 = arith.addf %46, %50 : vector<32x128xf32>
    %52 = arith.addf %4, %51 : vector<32x128xf32>
    %c0_16 = arith.constant 0 : index
    %c0_17 = arith.constant 0 : index
    %c0_18 = arith.constant 0 : index
    %53 = vector.load %arg5[%c0_16, %c0_17, %c0_18] : memref<1x1x128xf32, #tpu.memory_space<vmem>>, vector<1x1x128xf32>
    %54 = vector.shape_cast %53 : vector<1x1x128xf32> to vector<1x128xf32>
    %c0_19 = arith.constant 0 : index
    %c0_20 = arith.constant 0 : index
    %c0_21 = arith.constant 0 : index
    %55 = vector.load %arg6[%c0_19, %c0_20, %c0_21] : memref<1x1x128xf32, #tpu.memory_space<vmem>>, vector<1x1x128xf32>
    %56 = vector.shape_cast %55 : vector<1x1x128xf32> to vector<1x128xf32>
    %cst_22 = arith.constant dense<0.000000e+00> : vector<32xf32>
    %57 = vector.multi_reduction <add>, %52, %cst_22 [1] : vector<32x128xf32> to vector<32xf32>
    %58 = vector.shape_cast %57 : vector<32xf32> to vector<32x1xf32>
    %cst_23 = arith.constant 1.280000e+02 : f32
    %59 = vector.broadcast %cst_23 : f32 to vector<32x1xf32>
    %60 = arith.divf %58, %59 : vector<32x1xf32>
    %61 = arith.mulf %52, %52 : vector<32x128xf32>
    %cst_24 = arith.constant dense<0.000000e+00> : vector<32xf32>
    %62 = vector.multi_reduction <add>, %61, %cst_24 [1] : vector<32x128xf32> to vector<32xf32>
    %63 = vector.shape_cast %62 : vector<32xf32> to vector<32x1xf32>
    %cst_25 = arith.constant 1.280000e+02 : f32
    %64 = vector.broadcast %cst_25 : f32 to vector<32x1xf32>
    %65 = arith.divf %63, %64 : vector<32x1xf32>
    %66 = arith.mulf %60, %60 : vector<32x1xf32>
    %67 = arith.subf %65, %66 : vector<32x1xf32>
    %68 = vector.broadcast %60 : vector<32x1xf32> to vector<32x128xf32>
    %69 = arith.subf %52, %68 : vector<32x128xf32>
    %cst_26 = arith.constant 9.99999974E-6 : f32
    %70 = vector.broadcast %cst_26 : f32 to vector<32x1xf32>
    %71 = arith.addf %67, %70 : vector<32x1xf32>
    %72 = math.rsqrt %71 : vector<32x1xf32>
    %73 = vector.broadcast %72 : vector<32x1xf32> to vector<32x128xf32>
    %74 = arith.mulf %69, %73 : vector<32x128xf32>
    %75 = vector.broadcast %54 : vector<1x128xf32> to vector<32x128xf32>
    %76 = arith.mulf %74, %75 : vector<32x128xf32>
    %77 = vector.broadcast %56 : vector<1x128xf32> to vector<32x128xf32>
    %78 = arith.addf %76, %77 : vector<32x128xf32>
    %c0_27 = arith.constant 0 : index
    %c0_28 = arith.constant 0 : index
    %c0_29 = arith.constant 0 : index
    %79 = vector.load %arg7[%c0_27, %c0_28, %c0_29] : memref<1x128x256xf32, #tpu.memory_space<vmem>>, vector<1x128x256xf32>
    %80 = vector.shape_cast %79 : vector<1x128x256xf32> to vector<128x256xf32>
    %cst_30 = arith.constant dense<0.000000e+00> : vector<32x256xf32>
    %81 = tpu.matmul %78, %80, %cst_30 {dimension_numbers = #tpu.dot_dimension_numbers<[1], [0], [0], [1], [0, 0, 1, 1], [], []>} : vector<32x128xf32>, vector<128x256xf32>, vector<32x256xf32> -> vector<32x256xf32>
    %c0_31 = arith.constant 0 : index
    %c0_32 = arith.constant 0 : index
    %c0_33 = arith.constant 0 : index
    %82 = vector.load %arg8[%c0_31, %c0_32, %c0_33] : memref<1x1x256xf32, #tpu.memory_space<vmem>>, vector<1x1x256xf32>
    %83 = vector.shape_cast %82 : vector<1x1x256xf32> to vector<1x256xf32>
    %84 = vector.broadcast %83 : vector<1x256xf32> to vector<32x256xf32>
    %85 = arith.addf %81, %84 : vector<32x256xf32>
    %cst_34 = arith.constant 5.000000e-01 : f32
    %86 = vector.broadcast %cst_34 : f32 to vector<32x256xf32>
    %87 = arith.mulf %86, %85 : vector<32x256xf32>
    %cst_35 = arith.constant 0.707106769 : f32
    %88 = vector.broadcast %cst_35 : f32 to vector<32x256xf32>
    %89 = arith.mulf %85, %88 : vector<32x256xf32>
    %90 = math.erf %89 : vector<32x256xf32>
    %cst_36 = arith.constant 1.000000e+00 : f32
    %91 = vector.broadcast %cst_36 : f32 to vector<32x256xf32>
    %92 = arith.addf %91, %90 : vector<32x256xf32>
    %93 = arith.mulf %87, %92 : vector<32x256xf32>
    %c0_37 = arith.constant 0 : index
    %c0_38 = arith.constant 0 : index
    %c0_39 = arith.constant 0 : index
    %94 = vector.load %arg9[%c0_37, %c0_38, %c0_39] : memref<1x256x128xf32, #tpu.memory_space<vmem>>, vector<1x256x128xf32>
    %95 = vector.shape_cast %94 : vector<1x256x128xf32> to vector<256x128xf32>
    %cst_40 = arith.constant dense<0.000000e+00> : vector<32x128xf32>
    %96 = tpu.matmul %93, %95, %cst_40 {dimension_numbers = #tpu.dot_dimension_numbers<[1], [0], [0], [1], [0, 0, 1, 1], [], []>} : vector<32x256xf32>, vector<256x128xf32>, vector<32x128xf32> -> vector<32x128xf32>
    %c0_41 = arith.constant 0 : index
    %c0_42 = arith.constant 0 : index
    %c0_43 = arith.constant 0 : index
    %97 = vector.load %arg10[%c0_41, %c0_42, %c0_43] : memref<1x1x128xf32, #tpu.memory_space<vmem>>, vector<1x1x128xf32>
    %98 = vector.shape_cast %97 : vector<1x1x128xf32> to vector<1x128xf32>
    %99 = vector.broadcast %98 : vector<1x128xf32> to vector<32x128xf32>
    %100 = arith.addf %96, %99 : vector<32x128xf32>
    %101 = arith.addf %78, %100 : vector<32x128xf32>
    %c0_44 = arith.constant 0 : index
    %c0_45 = arith.constant 0 : index
    %c0_46 = arith.constant 0 : index
    %102 = vector.load %arg11[%c0_44, %c0_45, %c0_46] : memref<1x1x128xf32, #tpu.memory_space<vmem>>, vector<1x1x128xf32>
    %103 = vector.shape_cast %102 : vector<1x1x128xf32> to vector<1x128xf32>
    %c0_47 = arith.constant 0 : index
    %c0_48 = arith.constant 0 : index
    %c0_49 = arith.constant 0 : index
    %104 = vector.load %arg12[%c0_47, %c0_48, %c0_49] : memref<1x1x128xf32, #tpu.memory_space<vmem>>, vector<1x1x128xf32>
    %105 = vector.shape_cast %104 : vector<1x1x128xf32> to vector<1x128xf32>
    %cst_50 = arith.constant dense<0.000000e+00> : vector<32xf32>
    %106 = vector.multi_reduction <add>, %101, %cst_50 [1] : vector<32x128xf32> to vector<32xf32>
    %107 = vector.shape_cast %106 : vector<32xf32> to vector<32x1xf32>
    %cst_51 = arith.constant 1.280000e+02 : f32
    %108 = vector.broadcast %cst_51 : f32 to vector<32x1xf32>
    %109 = arith.divf %107, %108 : vector<32x1xf32>
    %110 = arith.mulf %101, %101 : vector<32x128xf32>
    %cst_52 = arith.constant dense<0.000000e+00> : vector<32xf32>
    %111 = vector.multi_reduction <add>, %110, %cst_52 [1] : vector<32x128xf32> to vector<32xf32>
    %112 = vector.shape_cast %111 : vector<32xf32> to vector<32x1xf32>
    %cst_53 = arith.constant 1.280000e+02 : f32
    %113 = vector.broadcast %cst_53 : f32 to vector<32x1xf32>
    %114 = arith.divf %112, %113 : vector<32x1xf32>
    %115 = arith.mulf %109, %109 : vector<32x1xf32>
    %116 = arith.subf %114, %115 : vector<32x1xf32>
    %117 = vector.broadcast %109 : vector<32x1xf32> to vector<32x128xf32>
    %118 = arith.subf %101, %117 : vector<32x128xf32>
    %cst_54 = arith.constant 9.99999974E-6 : f32
    %119 = vector.broadcast %cst_54 : f32 to vector<32x1xf32>
    %120 = arith.addf %116, %119 : vector<32x1xf32>
    %121 = math.rsqrt %120 : vector<32x1xf32>
    %122 = vector.broadcast %121 : vector<32x1xf32> to vector<32x128xf32>
    %123 = arith.mulf %118, %122 : vector<32x128xf32>
    %124 = vector.broadcast %103 : vector<1x128xf32> to vector<32x128xf32>
    %125 = arith.mulf %123, %124 : vector<32x128xf32>
    %126 = vector.broadcast %105 : vector<1x128xf32> to vector<32x128xf32>
    %127 = arith.addf %125, %126 : vector<32x128xf32>
    %128 = vector.shape_cast %127 : vector<32x128xf32> to vector<2x16x128xf32>
    %c0_55 = arith.constant 0 : index
    %c0_56 = arith.constant 0 : index
    %c0_57 = arith.constant 0 : index
    %129 = vector.load %arg14[%c0_55, %c0_56, %c0_57] : memref<2x16x128xf32, #tpu.memory_space<vmem>>, vector<2x16x128xf32>
    tpu.vector_store %arg14[%c0_55, %c0_56, %c0_57], %128 {strides = array<i32>} : memref<2x16x128xf32, #tpu.memory_space<vmem>>, vector<2x16x128xf32>,
    %c1_i32 = arith.constant 1 : i32
    %130 = arith.cmpi eq, %arg1, %c1_i32 : i32
    %131 = arith.extui %130 : i1 to i32
    %c0_i32_58 = arith.constant 0 : i32
    %132 = arith.cmpi ne, %131, %c0_i32_58 : i32
    scf.if %132 {
      %c0_59 = arith.constant 0 : index
      %c0_60 = arith.constant 0 : index
      %c0_61 = arith.constant 0 : index
      %133 = vector.load %arg14[%c0_59, %c0_60, %c0_61] : memref<2x16x128xf32, #tpu.memory_space<vmem>>, vector<2x16x128xf32>
      %c0_62 = arith.constant 0 : index
      %c0_63 = arith.constant 0 : index
      %c0_64 = arith.constant 0 : index
      %134 = vector.load %arg13[%c0_62, %c0_63, %c0_64] : memref<2x16x128xf32, #tpu.memory_space<vmem>>, vector<2x16x128xf32>
      tpu.vector_store %arg13[%c0_62, %c0_63, %c0_64], %133 {strides = array<i32>} : memref<2x16x128xf32, #tpu.memory_space<vmem>>, vector<2x16x128xf32>,
    } else {
    }
    return
  }
  func.func @transform_0(%arg0: i32, %arg1: i32) -> (i32, i32, i32) {
    %c0_i32 = arith.constant 0 : i32
    %c0_i32_0 = arith.constant 0 : i32
    %c0_i32_1 = arith.constant 0 : i32
    return %arg0, %c0_i32, %c0_i32_0 : i32, i32, i32
  }
  func.func @transform_1(%arg0: i32, %arg1: i32) -> (i32, i32, i32) {
    %c0_i32 = arith.constant 0 : i32
    %c0_i32_0 = arith.constant 0 : i32
    %c0_i32_1 = arith.constant 0 : i32
    return %arg1, %c0_i32, %c0_i32_0 : i32, i32, i32
  }
  func.func @transform_2(%arg0: i32, %arg1: i32) -> (i32, i32, i32) {
    %c0_i32 = arith.constant 0 : i32
    %c0_i32_0 = arith.constant 0 : i32
    %c0_i32_1 = arith.constant 0 : i32
    return %arg1, %c0_i32, %c0_i32_0 : i32, i32, i32
  }
  func.func @transform_3(%arg0: i32, %arg1: i32) -> (i32, i32, i32) {
    %c0_i32 = arith.constant 0 : i32
    %c0_i32_0 = arith.constant 0 : i32
    %c0_i32_1 = arith.constant 0 : i32
    return %arg1, %c0_i32, %c0_i32_0 : i32, i32, i32
  }
  func.func @transform_4(%arg0: i32, %arg1: i32) -> (i32, i32, i32) {
    %c0_i32 = arith.constant 0 : i32
    %c0_i32_0 = arith.constant 0 : i32
    %c0_i32_1 = arith.constant 0 : i32
    return %arg1, %c0_i32, %c0_i32_0 : i32, i32, i32
  }
  func.func @transform_5(%arg0: i32, %arg1: i32) -> (i32, i32, i32) {
    %c0_i32 = arith.constant 0 : i32
    %c0_i32_0 = arith.constant 0 : i32
    %c0_i32_1 = arith.constant 0 : i32
    return %arg1, %c0_i32, %c0_i32_0 : i32, i32, i32
  }
  func.func @transform_6(%arg0: i32, %arg1: i32) -> (i32, i32, i32) {
    %c0_i32 = arith.constant 0 : i32
    %c0_i32_0 = arith.constant 0 : i32
    %c0_i32_1 = arith.constant 0 : i32
    return %arg1, %c0_i32, %c0_i32_0 : i32, i32, i32
  }
  func.func @transform_7(%arg0: i32, %arg1: i32) -> (i32, i32, i32) {
    %c0_i32 = arith.constant 0 : i32
    %c0_i32_0 = arith.constant 0 : i32
    %c0_i32_1 = arith.constant 0 : i32
    return %arg1, %c0_i32, %c0_i32_0 : i32, i32, i32
  }
  func.func @transform_8(%arg0: i32, %arg1: i32) -> (i32, i32, i32) {
    %c0_i32 = arith.constant 0 : i32
    %c0_i32_0 = arith.constant 0 : i32
    %c0_i32_1 = arith.constant 0 : i32
    return %arg1, %c0_i32, %c0_i32_0 : i32, i32, i32
  }
  func.func @transform_9(%arg0: i32, %arg1: i32) -> (i32, i32, i32) {
    %c0_i32 = arith.constant 0 : i32
    %c0_i32_0 = arith.constant 0 : i32
    %c0_i32_1 = arith.constant 0 : i32
    return %arg1, %c0_i32, %c0_i32_0 : i32, i32, i32
  }
  func.func @transform_10(%arg0: i32, %arg1: i32) -> (i32, i32, i32) {
    %c0_i32 = arith.constant 0 : i32
    %c0_i32_0 = arith.constant 0 : i32
    %c0_i32_1 = arith.constant 0 : i32
    return %arg1, %c0_i32, %c0_i32_0 : i32, i32, i32
  }
  func.func @transform_11(%arg0: i32, %arg1: i32) -> (i32, i32, i32) {
    %c0_i32 = arith.constant 0 : i32
    %c0_i32_0 = arith.constant 0 : i32
    %c0_i32_1 = arith.constant 0 : i32
    return %arg0, %c0_i32, %c0_i32_0 : i32, i32, i32
  }
}

</mosaic_0001>

<llo_original>
// kernel: tpu_custom_call.1
$region0: #{tpu_custom_call.1}
  #allocation0 [shape = 'u32[]', space=smem, size = 0x4, offset = 0x4, fixed_abs, tag = 'smem constant byte address 0x4 - core index']
  #allocation1 [shape = 'u32[144,128]{1,0:T(1,128)}', space=vmem, size = 0x12000, scoped, tag = 'internal scratch']
  #allocation2 [shape = 'f32[2,16,128]{2,1,0:T(8,128)}', space=vmem, size = 0x4000, scoped, tag = 'scratch operand']
  %s0 = inlined_call_operand.hbm [shape: f32[2,16,128], index: 0, kind: input, shape index: {}]
  %s1 = inlined_call_operand.hbm [shape: f32[2,128,384], index: 1, kind: input, shape index: {}]
  %s2 = inlined_call_operand.hbm [shape: f32[2,128,128], index: 2, kind: input, shape index: {}]
  %s3 = inlined_call_operand.vmem [shape: f32[2,1,128], index: 3, kind: input, shape index: {}]
  %s4 = inlined_call_operand.hbm [shape: f32[2,1,128], index: 4, kind: input, shape index: {}]
  %s5 = inlined_call_operand.hbm [shape: f32[2,128,256], index: 5, kind: input, shape index: {}]
  %s6 = inlined_call_operand.vmem [shape: f32[2,1,256], index: 6, kind: input, shape index: {}]
  %s7 = inlined_call_operand.hbm [shape: f32[2,256,128], index: 7, kind: input, shape index: {}]
  %s8 = inlined_call_operand.vmem [shape: f32[2,1,128], index: 8, kind: input, shape index: {}]
  %s9 = inlined_call_operand.vmem [shape: f32[2,1,128], index: 9, kind: input, shape index: {}]
  %s10 = inlined_call_operand.vmem [shape: f32[2,1,128], index: 10, kind: input, shape index: {}]
  %s11 = inlined_call_operand.hbm [shape: f32[2,16,128], index: 11, kind: output, shape index: {}]
  %s12 = sld [smem:[#allocation0]]
  $region109: #{tpu_custom_call.1} parent=0
    _
  %s14 = ssub.s32 1, %s12
  %s15 = scalar_select 0, %s14, %s12
  $region1: #{tpu_custom_call.1} parent=0
    #allocation3 [shape = 'u8[16384]{0}', space=vmem, size = 0x4000, scoped, tag = 'input window, operand 0, single buffered']
    #allocation4 [shape = 's32[2]{0}', space=sflag, size = 0x8, scoped, tag = 'scoped memory for tpu_custom_call.1']
    #allocation5 [shape = 's32[2]{0}', space=sflag, size = 0x8, scoped, tag = 'scoped memory for tpu_custom_call.1']
    #allocation6 [shape = 'u8[393216]{0}', space=vmem, size = 0x60000, scoped, tag = 'input window, operand 1']
    #allocation7 [shape = 's32[2]{0}', space=sflag, size = 0x8, scoped, tag = 'scoped memory for tpu_custom_call.1']
    #allocation8 [shape = 'u8[131072]{0}', space=vmem, size = 0x20000, scoped, tag = 'input window, operand 2']
    #allocation9 [shape = 'u8[1024]{0}', space=vmem, size = 0x400, scoped, tag = 'input window, operand 4']
    #allocation10 [shape = 's32[2]{0}', space=sflag, size = 0x8, scoped, tag = 'scoped memory for tpu_custom_call.1']
    #allocation11 [shape = 'u8[262144]{0}', space=vmem, size = 0x40000, scoped, tag = 'input window, operand 5']
    #allocation12 [shape = 'u8[262144]{0}', space=vmem, size = 0x40000, scoped, tag = 'input window, operand 7']
    #allocation13 [shape = 's32[2]{0}', space=sflag, size = 0x8, scoped, tag = 'scoped memory for tpu_custom_call.1']
    #allocation14 [shape = 'u8[16384]{0}', space=vmem, size = 0x4000, scoped, tag = 'output window, operand 0, single buffered']
    %16 = vsyncpa [#allocation4], 0
    %17 = vsyncpa [#allocation7], 0
    %s18 = scalar_lea.sflag [#allocation7], 1
    %19 = vsyncpa %s18, 0
    %20 = vsyncpa [#allocation10], 0
    %s21 = scalar_lea.sflag [#allocation10], 1
    %22 = vsyncpa %s21, 0
    %23 = vsyncpa [#allocation13], 0
    %s24 = scalar_lea.sflag [#allocation13], 1
    %25 = vsyncpa %s24, 0
    %26 = vsyncpa [#allocation5], 0
    loop: start=0, step=1, limit=4
    $region2: #{tpu_custom_call.1} parent=1 // loop_pre_header
      _
    $region3: #{tpu_custom_call.1} parent=1 // loop_header
      %s28 = sphi 0, %s32
      %p29 = scmp.ge.s32.totalorder %s28, 4
      %s35 = sphi 0, %s47
      %s36 = sphi 0, %s43
      %s37 = sphi 0, %s35
      %s38 = sphi 0, %s36
      %s39 = sphi 0, %s37
      %s40 = sphi 0, %s38
      %s50 = sphi 0, %s52
      %s53 = sphi 0, %s50
      %s54 = sphi 0, %s53
      %s70 = sphi 0, %s54
      %s76 = sphi 0, %s78
      %s79 = sphi 0, %s76
      %s80 = sphi 0, %s79
      %s96 = sphi 0, %s80
      %s102 = sphi 0, %s104
      %s105 = sphi 0, %s102
      %s106 = sphi 0, %s105
      %s122 = sphi 0, %s106
      %s128 = sphi 0, %s130
      %s131 = sphi 0, %s128
      %s132 = sphi 0, %s131
      %s148 = sphi 0, %s132
      %s154 = sphi 0, %s156
      %s157 = sphi 0, %s154
      %s158 = sphi 0, %s157
      %s174 = sphi 0, %s158
      %s180 = sphi 0, %s182
      %s183 = sphi 0, %s180
      %s184 = sphi 0, %s183
      %s200 = sphi 0, %s184
      %s206 = sphi 0, %s208
      %s209 = sphi 0, %s206
      %s210 = sphi 0, %s209
      %s226 = sphi 0, %s210
      %s232 = sphi 0, %s234
      %s235 = sphi 0, %s232
      %s236 = sphi 0, %s235
      %s252 = sphi 0, %s236
      %s258 = sphi 0, %s260
      %s261 = sphi 0, %s258
      %s262 = sphi 0, %s261
      %s278 = sphi 0, %s262
      %s284 = sphi 0, %s286
      %s287 = sphi 0, %s284
      %s288 = sphi 0, %s287
      %s304 = sphi 0, %s288
      %s310 = sphi 0, %s312
      %s313 = sphi 0, %s310
      %s314 = sphi 0, %s313
      %s330 = sphi 0, %s314
      %s336 = sphi 0, %s338
      %s339 = sphi 0, %s336
      %s340 = sphi 0, %s339
      %s356 = sphi 0, %s340
    $region4: #{tpu_custom_call.1} parent=1 // loop_header_branch
      %31 = sbr.rel (%p29) target = $region8
    $region5: #{tpu_custom_call.1} parent=1 // loop_body
      %s33 = ssub.s32 %s28, 1
      %s34 = ssub.s32 %s28, 2
      %s41 = sadd.s32 1, %s36
      %p42 = scmp.ge.s32.totalorder %s41, 2
      %s43 = scalar_select %p42, 0, %s41
      %s44 = sadd.s32 1, %s35
      %s45 = scalar_select %p42, %s44, %s35
      %p46 = scmp.ge.s32.totalorder %s45, 1
      %s47 = scalar_select %p46, 0, %s45
      %s48 = ssub.s32 %s35, %s47
      %p49 = scmp.eq.s32.totalorder %s48, 0
      %s51 = sadd.s32 %s50, 1
      %s52 = scalar_select %p49, %s50, %s51
      %p55 = pneg %p49
      %p56 = scmp.eq.s32.totalorder %s28, 1
      %p57 = por %p55, %p56
      %p58 = scmp.ne.s32.totalorder %s50, %s53
      %p59 = scmp.eq.s32.totalorder %s28, 0
      %p60 = por %p58, %p59
      %p61 = scmp.ne.s32.totalorder %s50, %s53
      %p62 = scmp.eq.s32.totalorder %s33, 1
      %p63 = por %p61, %p62
      %p64 = scmp.ne.s32.totalorder %s53, %s54
      %p65 = scmp.eq.s32.totalorder %s33, 0
      %p66 = por %p64, %p65
      %p67 = scmp.ne.s32.totalorder %s53, %s54
      %p68 = scmp.eq.s32.totalorder %s34, 1
      %p69 = por %p67, %p68
      %p71 = scmp.ne.s32.totalorder %s54, %s70
      %p72 = scmp.eq.s32.totalorder %s34, 0
      %p73 = por %p71, %p72
      %s74 = ssub.s32 %s36, %s43
      %p75 = scmp.eq.s32.totalorder %s74, 0
      %s77 = sadd.s32 %s76, 1
      %s78 = scalar_select %p75, %s76, %s77
      %p81 = pneg %p75
      %p82 = scmp.eq.s32.totalorder %s28, 1
      %p83 = por %p81, %p82
      %p84 = scmp.ne.s32.totalorder %s76, %s79
      %p85 = scmp.eq.s32.totalorder %s28, 0
      %p86 = por %p84, %p85
      %p87 = scmp.ne.s32.totalorder %s76, %s79
      %p88 = scmp.eq.s32.totalorder %s33, 1
      %p89 = por %p87, %p88
      %p90 = scmp.ne.s32.totalorder %s79, %s80
      %p91 = scmp.eq.s32.totalorder %s33, 0
      %p92 = por %p90, %p91
      %p93 = scmp.ne.s32.totalorder %s79, %s80
      %p94 = scmp.eq.s32.totalorder %s34, 1
      %p95 = por %p93, %p94
      %p97 = scmp.ne.s32.totalorder %s80, %s96
      %p98 = scmp.eq.s32.totalorder %s34, 0
      %p99 = por %p97, %p98
      %s100 = ssub.s32 %s36, %s43
      %p101 = scmp.eq.s32.totalorder %s100, 0
      %s103 = sadd.s32 %s102, 1
      %s104 = scalar_select %p101, %s102, %s103
      %p107 = pneg %p101
      %p108 = scmp.eq.s32.totalorder %s28, 1
      %p109 = por %p107, %p108
      %p110 = scmp.ne.s32.totalorder %s102, %s105
      %p111 = scmp.eq.s32.totalorder %s28, 0
      %p112 = por %p110, %p111
      %p113 = scmp.ne.s32.totalorder %s102, %s105
      %p114 = scmp.eq.s32.totalorder %s33, 1
      %p115 = por %p113, %p114
      %p116 = scmp.ne.s32.totalorder %s105, %s106
      %p117 = scmp.eq.s32.totalorder %s33, 0
      %p118 = por %p116, %p117
      %p119 = scmp.ne.s32.totalorder %s105, %s106
      %p120 = scmp.eq.s32.totalorder %s34, 1
      %p121 = por %p119, %p120
      %p123 = scmp.ne.s32.totalorder %s106, %s122
      %p124 = scmp.eq.s32.totalorder %s34, 0
      %p125 = por %p123, %p124
      %s126 = ssub.s32 %s36, %s43
      %p127 = scmp.eq.s32.totalorder %s126, 0
      %s129 = sadd.s32 %s128, 1
      %s130 = scalar_select %p127, %s128, %s129
      %p133 = pneg %p127
      %p134 = scmp.eq.s32.totalorder %s28, 1
      %p135 = por %p133, %p134
      %p136 = scmp.ne.s32.totalorder %s128, %s131
      %p137 = scmp.eq.s32.totalorder %s28, 0
      %p138 = por %p136, %p137
      %p139 = scmp.ne.s32.totalorder %s128, %s131
      %p140 = scmp.eq.s32.totalorder %s33, 1
      %p141 = por %p139, %p140
      %p142 = scmp.ne.s32.totalorder %s131, %s132
      %p143 = scmp.eq.s32.totalorder %s33, 0
      %p144 = por %p142, %p143
      %p145 = scmp.ne.s32.totalorder %s131, %s132
      %p146 = scmp.eq.s32.totalorder %s34, 1
      %p147 = por %p145, %p146
      %p149 = scmp.ne.s32.totalorder %s132, %s148
      %p150 = scmp.eq.s32.totalorder %s34, 0
      %p151 = por %p149, %p150
      %s152 = ssub.s32 %s36, %s43
      %p153 = scmp.eq.s32.totalorder %s152, 0
      %s155 = sadd.s32 %s154, 1
      %s156 = scalar_select %p153, %s154, %s155
      %p159 = pneg %p153
      %p160 = scmp.eq.s32.totalorder %s28, 1
      %p161 = por %p159, %p160
      %p162 = scmp.ne.s32.totalorder %s154, %s157
      %p163 = scmp.eq.s32.totalorder %s28, 0
      %p164 = por %p162, %p163
      %p165 = scmp.ne.s32.totalorder %s154, %s157
      %p166 = scmp.eq.s32.totalorder %s33, 1
      %p167 = por %p165, %p166
      %p168 = scmp.ne.s32.totalorder %s157, %s158
      %p169 = scmp.eq.s32.totalorder %s33, 0
      %p170 = por %p168, %p169
      %p171 = scmp.ne.s32.totalorder %s157, %s158
      %p172 = scmp.eq.s32.totalorder %s34, 1
      %p173 = por %p171, %p172
      %p175 = scmp.ne.s32.totalorder %s158, %s174
      %p176 = scmp.eq.s32.totalorder %s34, 0
      %p177 = por %p175, %p176
      %s178 = ssub.s32 %s36, %s43
      %p179 = scmp.eq.s32.totalorder %s178, 0
      %s181 = sadd.s32 %s180, 1
      %s182 = scalar_select %p179, %s180, %s181
      %p185 = pneg %p179
      %p186 = scmp.eq.s32.totalorder %s28, 1
      %p187 = por %p185, %p186
      %p188 = scmp.ne.s32.totalorder %s180, %s183
      %p189 = scmp.eq.s32.totalorder %s28, 0
      %p190 = por %p188, %p189
      %p191 = scmp.ne.s32.totalorder %s180, %s183
      %p192 = scmp.eq.s32.totalorder %s33, 1
      %p193 = por %p191, %p192
      %p194 = scmp.ne.s32.totalorder %s183, %s184
      %p195 = scmp.eq.s32.totalorder %s33, 0
      %p196 = por %p194, %p195
      %p197 = scmp.ne.s32.totalorder %s183, %s184
      %p198 = scmp.eq.s32.totalorder %s34, 1
      %p199 = por %p197, %p198
      %p201 = scmp.ne.s32.totalorder %s184, %s200
      %p202 = scmp.eq.s32.totalorder %s34, 0
      %p203 = por %p201, %p202
      %s204 = ssub.s32 %s36, %s43
      %p205 = scmp.eq.s32.totalorder %s204, 0
      %s207 = sadd.s32 %s206, 1
      %s208 = scalar_select %p205, %s206, %s207
      %p211 = pneg %p205
      %p212 = scmp.eq.s32.totalorder %s28, 1
      %p213 = por %p211, %p212
      %p214 = scmp.ne.s32.totalorder %s206, %s209
      %p215 = scmp.eq.s32.totalorder %s28, 0
      %p216 = por %p214, %p215
      %p217 = scmp.ne.s32.totalorder %s206, %s209
      %p218 = scmp.eq.s32.totalorder %s33, 1
      %p219 = por %p217, %p218
      %p220 = scmp.ne.s32.totalorder %s209, %s210
      %p221 = scmp.eq.s32.totalorder %s33, 0
      %p222 = por %p220, %p221
      %p223 = scmp.ne.s32.totalorder %s209, %s210
      %p224 = scmp.eq.s32.totalorder %s34, 1
      %p225 = por %p223, %p224
      %p227 = scmp.ne.s32.totalorder %s210, %s226
      %p228 = scmp.eq.s32.totalorder %s34, 0
      %p229 = por %p227, %p228
      %s230 = ssub.s32 %s36, %s43
      %p231 = scmp.eq.s32.totalorder %s230, 0
      %s233 = sadd.s32 %s232, 1
      %s234 = scalar_select %p231, %s232, %s233
      %p237 = pneg %p231
      %p238 = scmp.eq.s32.totalorder %s28, 1
      %p239 = por %p237, %p238
      %p240 = scmp.ne.s32.totalorder %s232, %s235
      %p241 = scmp.eq.s32.totalorder %s28, 0
      %p242 = por %p240, %p241
      %p243 = scmp.ne.s32.totalorder %s232, %s235
      %p244 = scmp.eq.s32.totalorder %s33, 1
      %p245 = por %p243, %p244
      %p246 = scmp.ne.s32.totalorder %s235, %s236
      %p247 = scmp.eq.s32.totalorder %s33, 0
      %p248 = por %p246, %p247
      %p249 = scmp.ne.s32.totalorder %s235, %s236
      %p250 = scmp.eq.s32.totalorder %s34, 1
      %p251 = por %p249, %p250
      %p253 = scmp.ne.s32.totalorder %s236, %s252
      %p254 = scmp.eq.s32.totalorder %s34, 0
      %p255 = por %p253, %p254
      %s256 = ssub.s32 %s36, %s43
      %p257 = scmp.eq.s32.totalorder %s256, 0
      %s259 = sadd.s32 %s258, 1
      %s260 = scalar_select %p257, %s258, %s259
      %p263 = pneg %p257
      %p264 = scmp.eq.s32.totalorder %s28, 1
      %p265 = por %p263, %p264
      %p266 = scmp.ne.s32.totalorder %s258, %s261
      %p267 = scmp.eq.s32.totalorder %s28, 0
      %p268 = por %p266, %p267
      %p269 = scmp.ne.s32.totalorder %s258, %s261
      %p270 = scmp.eq.s32.totalorder %s33, 1
      %p271 = por %p269, %p270
      %p272 = scmp.ne.s32.totalorder %s261, %s262
      %p273 = scmp.eq.s32.totalorder %s33, 0
      %p274 = por %p272, %p273
      %p275 = scmp.ne.s32.totalorder %s261, %s262
      %p276 = scmp.eq.s32.totalorder %s34, 1
      %p277 = por %p275, %p276
      %p279 = scmp.ne.s32.totalorder %s262, %s278
      %p280 = scmp.eq.s32.totalorder %s34, 0
      %p281 = por %p279, %p280
      %s282 = ssub.s32 %s36, %s43
      %p283 = scmp.eq.s32.totalorder %s282, 0
      %s285 = sadd.s32 %s284, 1
      %s286 = scalar_select %p283, %s284, %s285
      %p289 = pneg %p283
      %p290 = scmp.eq.s32.totalorder %s28, 1
      %p291 = por %p289, %p290
      %p292 = scmp.ne.s32.totalorder %s284, %s287
      %p293 = scmp.eq.s32.totalorder %s28, 0
      %p294 = por %p292, %p293
      %p295 = scmp.ne.s32.totalorder %s284, %s287
      %p296 = scmp.eq.s32.totalorder %s33, 1
      %p297 = por %p295, %p296
      %p298 = scmp.ne.s32.totalorder %s287, %s288
      %p299 = scmp.eq.s32.totalorder %s33, 0
      %p300 = por %p298, %p299
      %p301 = scmp.ne.s32.totalorder %s287, %s288
      %p302 = scmp.eq.s32.totalorder %s34, 1
      %p303 = por %p301, %p302
      %p305 = scmp.ne.s32.totalorder %s288, %s304
      %p306 = scmp.eq.s32.totalorder %s34, 0
      %p307 = por %p305, %p306
      %s308 = ssub.s32 %s36, %s43
      %p309 = scmp.eq.s32.totalorder %s308, 0
      %s311 = sadd.s32 %s310, 1
      %s312 = scalar_select %p309, %s310, %s311
      %p315 = pneg %p309
      %p316 = scmp.eq.s32.totalorder %s28, 1
      %p317 = por %p315, %p316
      %p318 = scmp.ne.s32.totalorder %s310, %s313
      %p319 = scmp.eq.s32.totalorder %s28, 0
      %p320 = por %p318, %p319
      %p321 = scmp.ne.s32.totalorder %s310, %s313
      %p322 = scmp.eq.s32.totalorder %s33, 1
      %p323 = por %p321, %p322
      %p324 = scmp.ne.s32.totalorder %s313, %s314
      %p325 = scmp.eq.s32.totalorder %s33, 0
      %p326 = por %p324, %p325
      %p327 = scmp.ne.s32.totalorder %s313, %s314
      %p328 = scmp.eq.s32.totalorder %s34, 1
      %p329 = por %p327, %p328
      %p331 = scmp.ne.s32.totalorder %s314, %s330
      %p332 = scmp.eq.s32.totalorder %s34, 0
      %p333 = por %p331, %p332
      %s334 = ssub.s32 %s35, %s47
      %p335 = scmp.eq.s32.totalorder %s334, 0
      %s337 = sadd.s32 %s336, 1
      %s338 = scalar_select %p335, %s336, %s337
      %p341 = pneg %p335
      %p342 = scmp.eq.s32.totalorder %s28, 1
      %p343 = por %p341, %p342
      %p344 = scmp.ne.s32.totalorder %s336, %s339
      %p345 = scmp.eq.s32.totalorder %s28, 0
      %p346 = por %p344, %p345
      %p347 = scmp.ne.s32.totalorder %s336, %s339
      %p348 = scmp.eq.s32.totalorder %s33, 1
      %p349 = por %p347, %p348
      %p350 = scmp.ne.s32.totalorder %s339, %s340
      %p351 = scmp.eq.s32.totalorder %s33, 0
      %p352 = por %p350, %p351
      %p353 = scmp.ne.s32.totalorder %s339, %s340
      %p354 = scmp.eq.s32.totalorder %s34, 1
      %p355 = por %p353, %p354
      %p357 = scmp.ne.s32.totalorder %s340, %s356
      %p358 = scmp.eq.s32.totalorder %s34, 0
      %p359 = por %p357, %p358
      %p360 = scmp.le.s32.totalorder 1, %s28
      %p361 = scmp.lt.s32.totalorder %s28, 3
      %p362 = pnand %p360, %p361
      %p363 = pneg %p362
      // Predicated region
      $region9: #{tpu_custom_call.1} parent=5 // pred_check
        _
      $region10: #{tpu_custom_call.1} parent=5 // pred_check_branch
        %365 = sbr.rel (%p362) target = $region12
      $region11: #{tpu_custom_call.1} parent=5 // pred_region
        %s366 = ssub.s32 %s28, 1
        // Predicated region
        $region13: #{tpu_custom_call.1} parent=11 // pred_check
          %p367 = pneg %p66
        $region14: #{tpu_custom_call.1} parent=11 // pred_check_branch
          %369 = sbr.rel (%p367) target = $region16
        $region15: #{tpu_custom_call.1} parent=11 // pred_region
          %s370 = smul.u32 2, %s37
          %s372 = ssub.s32 512, 512
          %373 = vsyncadd [#allocation4], %s372
          %s374 = smul.addr %s370, 2
          %s375 = smul.addr %s374, 128
          %s376 = scalar_lea.hbm %s0, %s375
          %s377 = sshll.u32 [#allocation3], 4
          %s378 = int_to_ptr.vmem [resolvable:$true] %s377
          %383 = dma.hbm_to_vmem [thread:$0]  %s376, 512, %s378, [#allocation4], 128, 128, 8
        $region16: #{tpu_custom_call.1} parent=11 // pred_fallthru
          _
      $region12: #{tpu_custom_call.1} parent=5 // pred_fallthru
        _
      %p384 = scmp.lt.s32.totalorder %s28, 2
      // Predicated region
      $region17: #{tpu_custom_call.1} parent=5 // pred_check
        %p385 = pneg %p384
      $region18: #{tpu_custom_call.1} parent=5 // pred_check_branch
        %387 = sbr.rel (%p385) target = $region20
      $region19: #{tpu_custom_call.1} parent=5 // pred_region
        // Predicated region
        $region21: #{tpu_custom_call.1} parent=19 // pred_check
          %p388 = pneg %p86
        $region22: #{tpu_custom_call.1} parent=19 // pred_check_branch
          %390 = sbr.rel (%p388) target = $region24
        $region23: #{tpu_custom_call.1} parent=19 // pred_region
          %s391 = sand.u32 %s28, 1
          %s392 = scalar_lea.sflag [#allocation7], %s391
          %s393 = sand.u32 %s76, 1
          %s394 = smul.addr %s393, 384
          %s395 = scalar_lea.vmem [#allocation6], %s394
          %s397 = ssub.s32 6144, 6144
          %398 = vsyncadd %s392, %s397
          %s399 = smul.addr %s36, 48
          %s400 = smul.addr %s399, 128
          %s401 = scalar_lea.hbm %s1, %s400
          %s402 = sshll.u32 %s395, 4
          %s403 = int_to_ptr.vmem [resolvable:$true] %s402
          %408 = dma.hbm_to_vmem [thread:$0]  %s401, 6144, %s403, %s392, 384, 384, 24
        $region24: #{tpu_custom_call.1} parent=19 // pred_fallthru
          _
        // Predicated region
        $region25: #{tpu_custom_call.1} parent=19 // pred_check
          %p409 = pneg %p112
        $region26: #{tpu_custom_call.1} parent=19 // pred_check_branch
          %411 = sbr.rel (%p409) target = $region28
        $region27: #{tpu_custom_call.1} parent=19 // pred_region
          %s412 = sand.u32 %s28, 1
          %s413 = scalar_lea.sflag [#allocation7], %s412
          %s414 = sand.u32 %s102, 1
          %s415 = smul.addr %s414, 128
          %s416 = scalar_lea.vmem [#allocation8], %s415
          %s418 = ssub.s32 2048, 2048
          %419 = vsyncadd %s413, %s418
          %s420 = smul.addr %s36, 16
          %s421 = smul.addr %s420, 128
          %s422 = scalar_lea.hbm %s2, %s421
          %s423 = sshll.u32 %s416, 4
          %s424 = int_to_ptr.vmem [resolvable:$true] %s423
          %429 = dma.hbm_to_vmem [thread:$0]  %s422, 2048, %s424, %s413, 128, 128, 8
        $region28: #{tpu_custom_call.1} parent=19 // pred_fallthru
          _
        // Predicated region
        $region29: #{tpu_custom_call.1} parent=19 // pred_check
          %p430 = pneg %p138
        $region30: #{tpu_custom_call.1} parent=19 // pred_check_branch
          %432 = sbr.rel (%p430) target = $region32
        $region31: #{tpu_custom_call.1} parent=19 // pred_region
          %p433 = scmp.lt.s32.totalorder %s36, 1
          %s434 = scalar_select %p433, %s36, 1
          %s435 = scalar_lea.vmem %s3, %s434
        $region32: #{tpu_custom_call.1} parent=19 // pred_fallthru
          _
        // Predicated region
        $region33: #{tpu_custom_call.1} parent=19 // pred_check
          %p436 = pneg %p164
        $region34: #{tpu_custom_call.1} parent=19 // pred_check_branch
          %438 = sbr.rel (%p436) target = $region36
        $region35: #{tpu_custom_call.1} parent=19 // pred_region
          %s439 = sand.u32 %s28, 1
          %s440 = scalar_lea.sflag [#allocation10], %s439
          %s441 = sand.u32 %s154, 1
          %s442 = scalar_lea.vmem [#allocation9], %s441
          %s444 = ssub.s32 16, 16
          %445 = vsyncadd %s440, %s444
          %s446 = smul.addr %s36, 16
          %s447 = scalar_lea.hbm %s4, %s446
          %s449 = sshll.u32 %s442, 4
          %s450 = int_to_ptr.vmem [resolvable:$true] %s449
          %452 = dma.hbm_to_vmem [thread:$0]  %s447, 16, %s450, %s440
        $region36: #{tpu_custom_call.1} parent=19 // pred_fallthru
          _
        // Predicated region
        $region37: #{tpu_custom_call.1} parent=19 // pred_check
          %p453 = pneg %p190
        $region38: #{tpu_custom_call.1} parent=19 // pred_check_branch
          %455 = sbr.rel (%p453) target = $region40
        $region39: #{tpu_custom_call.1} parent=19 // pred_region
          %s456 = sand.u32 %s28, 1
          %s457 = scalar_lea.sflag [#allocation10], %s456
          %s458 = sand.u32 %s180, 1
          %s459 = smul.addr %s458, 256
          %s460 = scalar_lea.vmem [#allocation11], %s459
          %s462 = ssub.s32 4096, 4096
          %463 = vsyncadd %s457, %s462
          %s464 = smul.addr %s36, 32
          %s465 = smul.addr %s464, 128
          %s466 = scalar_lea.hbm %s5, %s465
          %s467 = sshll.u32 %s460, 4
          %s468 = int_to_ptr.vmem [resolvable:$true] %s467
          %473 = dma.hbm_to_vmem [thread:$0]  %s466, 4096, %s468, %s457, 256, 256, 16
        $region40: #{tpu_custom_call.1} parent=19 // pred_fallthru
          _
        // Predicated region
        $region41: #{tpu_custom_call.1} parent=19 // pred_check
          %p474 = pneg %p216
        $region42: #{tpu_custom_call.1} parent=19 // pred_check_branch
          %476 = sbr.rel (%p474) target = $region44
        $region43: #{tpu_custom_call.1} parent=19 // pred_region
          %p477 = scmp.lt.s32.totalorder %s36, 1
          %s478 = scalar_select %p477, %s36, 1
          %s479 = smul.addr %s478, 2
          %s480 = scalar_lea.vmem %s6, %s479
        $region44: #{tpu_custom_call.1} parent=19 // pred_fallthru
          _
        // Predicated region
        $region45: #{tpu_custom_call.1} parent=19 // pred_check
          %p481 = pneg %p242
        $region46: #{tpu_custom_call.1} parent=19 // pred_check_branch
          %483 = sbr.rel (%p481) target = $region48
        $region47: #{tpu_custom_call.1} parent=19 // pred_region
          %s484 = sand.u32 %s232, 1
          %s485 = scalar_lea.sflag [#allocation13], %s484
          %s486 = sand.u32 %s232, 1
          %s487 = smul.addr %s486, 256
          %s488 = scalar_lea.vmem [#allocation12], %s487
          %s490 = ssub.s32 4096, 4096
          %491 = vsyncadd %s485, %s490
          %s492 = smul.addr %s36, 32
          %s493 = smul.addr %s492, 128
          %s494 = scalar_lea.hbm %s7, %s493
          %s495 = sshll.u32 %s488, 4
          %s496 = int_to_ptr.vmem [resolvable:$true] %s495
          %501 = dma.hbm_to_vmem [thread:$0]  %s494, 4096, %s496, %s485, 128, 128, 8
        $region48: #{tpu_custom_call.1} parent=19 // pred_fallthru
          _
        // Predicated region
        $region49: #{tpu_custom_call.1} parent=19 // pred_check
          %p502 = pneg %p268
        $region50: #{tpu_custom_call.1} parent=19 // pred_check_branch
          %504 = sbr.rel (%p502) target = $region52
        $region51: #{tpu_custom_call.1} parent=19 // pred_region
          %p505 = scmp.lt.s32.totalorder %s36, 1
          %s506 = scalar_select %p505, %s36, 1
          %s507 = scalar_lea.vmem %s8, %s506
        $region52: #{tpu_custom_call.1} parent=19 // pred_fallthru
          _
        // Predicated region
        $region53: #{tpu_custom_call.1} parent=19 // pred_check
          %p508 = pneg %p294
        $region54: #{tpu_custom_call.1} parent=19 // pred_check_branch
          %510 = sbr.rel (%p508) target = $region56
        $region55: #{tpu_custom_call.1} parent=19 // pred_region
          %p511 = scmp.lt.s32.totalorder %s36, 1
          %s512 = scalar_select %p511, %s36, 1
          %s513 = scalar_lea.vmem %s9, %s512
        $region56: #{tpu_custom_call.1} parent=19 // pred_fallthru
          _
        // Predicated region
        $region57: #{tpu_custom_call.1} parent=19 // pred_check
          %p514 = pneg %p320
        $region58: #{tpu_custom_call.1} parent=19 // pred_check_branch
          %516 = sbr.rel (%p514) target = $region60
        $region59: #{tpu_custom_call.1} parent=19 // pred_region
          %p517 = scmp.lt.s32.totalorder %s36, 1
          %s518 = scalar_select %p517, %s36, 1
          %s519 = scalar_lea.vmem %s10, %s518
        $region60: #{tpu_custom_call.1} parent=19 // pred_fallthru
          _
      $region20: #{tpu_custom_call.1} parent=5 // pred_fallthru
        _
      %p520 = scmp.le.s32.totalorder 1, %s28
      %p521 = scmp.lt.s32.totalorder %s28, 3
      %p522 = pnand %p520, %p521
      %p523 = pneg %p522
      // Predicated region
      $region61: #{tpu_custom_call.1} parent=5 // pred_check
        _
      $region62: #{tpu_custom_call.1} parent=5 // pred_check_branch
        %525 = sbr.rel (%p522) target = $region64
      $region63: #{tpu_custom_call.1} parent=5 // pred_region
        %s526 = ssub.s32 %s28, 1
        // Predicated region
        $region65: #{tpu_custom_call.1} parent=63 // pred_check
          %p527 = pneg %p66
        $region66: #{tpu_custom_call.1} parent=63 // pred_check_branch
          %529 = sbr.rel (%p527) target = $region68
        $region67: #{tpu_custom_call.1} parent=63 // pred_region
          %530 = dma.done [#allocation4], 512
        $region68: #{tpu_custom_call.1} parent=63 // pred_fallthru
          _
        %s531 = sand.u32 %s33, 1
        %s532 = scalar_lea.sflag [#allocation7], %s531
        %s533 = sand.u32 %s79, 1
        %s534 = smul.addr %s533, 384
        %s535 = scalar_lea.vmem [#allocation6], %s534
        // Predicated region
        $region69: #{tpu_custom_call.1} parent=63 // pred_check
          %p536 = pneg %p92
        $region70: #{tpu_custom_call.1} parent=63 // pred_check_branch
          %538 = sbr.rel (%p536) target = $region72
        $region71: #{tpu_custom_call.1} parent=63 // pred_region
          %539 = dma.done %s532, 6144
        $region72: #{tpu_custom_call.1} parent=63 // pred_fallthru
          _
        %s540 = sand.u32 %s33, 1
        %s541 = scalar_lea.sflag [#allocation7], %s540
        %s542 = sand.u32 %s105, 1
        %s543 = smul.addr %s542, 128
        %s544 = scalar_lea.vmem [#allocation8], %s543
        // Predicated region
        $region73: #{tpu_custom_call.1} parent=63 // pred_check
          %p545 = pneg %p118
        $region74: #{tpu_custom_call.1} parent=63 // pred_check_branch
          %547 = sbr.rel (%p545) target = $region76
        $region75: #{tpu_custom_call.1} parent=63 // pred_region
          %548 = dma.done %s541, 2048
        $region76: #{tpu_custom_call.1} parent=63 // pred_fallthru
          _
        %s549 = sand.u32 %s33, 1
        %s550 = scalar_lea.sflag [#allocation10], %s549
        %s551 = sand.u32 %s157, 1
        %s552 = scalar_lea.vmem [#allocation9], %s551
        // Predicated region
        $region77: #{tpu_custom_call.1} parent=63 // pred_check
          %p553 = pneg %p170
        $region78: #{tpu_custom_call.1} parent=63 // pred_check_branch
          %555 = sbr.rel (%p553) target = $region80
        $region79: #{tpu_custom_call.1} parent=63 // pred_region
          %556 = dma.done %s550, 16
        $region80: #{tpu_custom_call.1} parent=63 // pred_fallthru
          _
        %s557 = sand.u32 %s33, 1
        %s558 = scalar_lea.sflag [#allocation10], %s557
        %s559 = sand.u32 %s183, 1
        %s560 = smul.addr %s559, 256
        %s561 = scalar_lea.vmem [#allocation11], %s560
        // Predicated region
        $region81: #{tpu_custom_call.1} parent=63 // pred_check
          %p562 = pneg %p196
        $region82: #{tpu_custom_call.1} parent=63 // pred_check_branch
          %564 = sbr.rel (%p562) target = $region84
        $region83: #{tpu_custom_call.1} parent=63 // pred_region
          %565 = dma.done %s558, 4096
        $region84: #{tpu_custom_call.1} parent=63 // pred_fallthru
          _
        %s566 = sand.u32 %s235, 1
        %s567 = scalar_lea.sflag [#allocation13], %s566
        %s568 = sand.u32 %s235, 1
        %s569 = smul.addr %s568, 256
        %s570 = scalar_lea.vmem [#allocation12], %s569
        // Predicated region
        $region85: #{tpu_custom_call.1} parent=63 // pred_check
          %p571 = pneg %p248
        $region86: #{tpu_custom_call.1} parent=63 // pred_check_branch
          %573 = sbr.rel (%p571) target = $region88
        $region87: #{tpu_custom_call.1} parent=63 // pred_region
          %574 = dma.done %s567, 4096
        $region88: #{tpu_custom_call.1} parent=63 // pred_fallthru
          _
        %p575 = pneg %p66
        %p576 = pneg %p63
        %s577 = sand.u32 %s33, 1
        %s578 = scalar_lea.sflag [#allocation7], %s577
        %s579 = sand.u32 %s79, 1
        %s580 = smul.addr %s579, 384
        %s581 = scalar_lea.vmem [#allocation6], %s580
        %p582 = pneg %p92
        %p583 = pneg %p89
        %s584 = sand.u32 %s33, 1
        %s585 = scalar_lea.sflag [#allocation7], %s584
        %s586 = sand.u32 %s105, 1
        %s587 = smul.addr %s586, 128
        %s588 = scalar_lea.vmem [#allocation8], %s587
        %p589 = pneg %p118
        %p590 = pneg %p115
        %p591 = scmp.lt.s32.totalorder %s38, 1
        %s592 = scalar_select %p591, %s38, 1
        %s593 = scalar_lea.vmem %s3, %s592
        %p594 = pneg %p144
        %p595 = pneg %p141
        %s596 = sand.u32 %s33, 1
        %s597 = scalar_lea.sflag [#allocation10], %s596
        %s598 = sand.u32 %s157, 1
        %s599 = scalar_lea.vmem [#allocation9], %s598
        %p600 = pneg %p170
        %p601 = pneg %p167
        %s602 = sand.u32 %s33, 1
        %s603 = scalar_lea.sflag [#allocation10], %s602
        %s604 = sand.u32 %s183, 1
        %s605 = smul.addr %s604, 256
        %s606 = scalar_lea.vmem [#allocation11], %s605
        %p607 = pneg %p196
        %p608 = pneg %p193
        %p609 = scmp.lt.s32.totalorder %s38, 1
        %s610 = scalar_select %p609, %s38, 1
        %s611 = smul.addr %s610, 2
        %s612 = scalar_lea.vmem %s6, %s611
        %p613 = pneg %p222
        %p614 = pneg %p219
        %s615 = sand.u32 %s235, 1
        %s616 = scalar_lea.sflag [#allocation13], %s615
        %s617 = sand.u32 %s235, 1
        %s618 = smul.addr %s617, 256
        %s619 = scalar_lea.vmem [#allocation12], %s618
        %p620 = pneg %p248
        %p621 = pneg %p245
        %p622 = scmp.lt.s32.totalorder %s38, 1
        %s623 = scalar_select %p622, %s38, 1
        %s624 = scalar_lea.vmem %s8, %s623
        %p625 = pneg %p274
        %p626 = pneg %p271
        %p627 = scmp.lt.s32.totalorder %s38, 1
        %s628 = scalar_select %p627, %s38, 1
        %s629 = scalar_lea.vmem %s9, %s628
        %p630 = pneg %p300
        %p631 = pneg %p297
        %p632 = scmp.lt.s32.totalorder %s38, 1
        %s633 = scalar_select %p632, %s38, 1
        %s634 = scalar_lea.vmem %s10, %s633
        %p635 = pneg %p326
        %p636 = pneg %p323
        %p637 = pneg %p352
        %p638 = pneg %p349
        %s639 = smul.u32 2, %s37
        %p640 = scmp.lt.s32.totalorder %s38, 1
        %s641 = scalar_select %p640, %s38, 1
        %s642 = scalar_lea.vmem %s3, %s641
        %p643 = scmp.lt.s32.totalorder %s38, 1
        %s644 = scalar_select %p643, %s38, 1
        %s645 = smul.addr %s644, 2
        %s646 = scalar_lea.vmem %s6, %s645
        %p647 = scmp.lt.s32.totalorder %s38, 1
        %s648 = scalar_select %p647, %s38, 1
        %s649 = scalar_lea.vmem %s8, %s648
        %p650 = scmp.lt.s32.totalorder %s38, 1
        %s651 = scalar_select %p650, %s38, 1
        %s652 = scalar_lea.vmem %s9, %s651
        %p653 = scmp.lt.s32.totalorder %s38, 1
        %s654 = scalar_select %p653, %s38, 1
        %s655 = scalar_lea.vmem %s10, %s654
        %s656 = smul.u32 2, %s37
        %p657 = scmp.eq.s32.totalorder %s38, 0
        // Predicated region
        $region89: #{tpu_custom_call.1} parent=63 // pred_check
          %p658 = pneg %p657
        $region90: #{tpu_custom_call.1} parent=63 // pred_check_branch
          %660 = sbr.rel (%p658) target = $region92
        $region91: #{tpu_custom_call.1} parent=63 // pred_region
          %v661 = vld [vmem:[#allocation3] sm:$0xff]
          %v662 = vld [vmem:[#allocation3 + $0x8] sm:$0xff]
          %v663 = vld [vmem:[#allocation3 + $0x10] sm:$0xff]
          %v664 = vld [vmem:[#allocation3 + $0x18] sm:$0xff]
          %665 = vst [vmem:[#allocation2] sm:$0xff] %v661
          %666 = vst [vmem:[#allocation2 + $0x8] sm:$0xff] %v662
          %667 = vst [vmem:[#allocation2 + $0x10] sm:$0xff] %v663
          %668 = vst [vmem:[#allocation2 + $0x18] sm:$0xff] %v664
        $region92: #{tpu_custom_call.1} parent=63 // pred_fallthru
          _
        %v669 = vld [vmem:[#allocation2] sm:$0xff]
        %v670 = vld [vmem:[#allocation2 + $0x8] sm:$0xff]
        %v671 = vld [vmem:[#allocation2 + $0x10] sm:$0xff]
        %v672 = vld [vmem:[#allocation2 + $0x18] sm:$0xff]
        %v673 = vld [vmem:[%s535] sm:$0xff]
        %v674 = vld [vmem:[%s535 + $0x8] sm:$0xff]
        %v675 = vld [vmem:[%s535 + $0x10] sm:$0xff]
        %v676 = vld [vmem:[%s535 + $0x18] sm:$0xff]
        %v677 = vld [vmem:[%s535 + $0x20] sm:$0xff]
        %v678 = vld [vmem:[%s535 + $0x28] sm:$0xff]
        %v679 = vld [vmem:[%s535 + $0x30] sm:$0xff]
        %v680 = vld [vmem:[%s535 + $0x38] sm:$0xff]
        %v681 = vld [vmem:[%s535 + $0x40] sm:$0xff]
        %v682 = vld [vmem:[%s535 + $0x48] sm:$0xff]
        %v683 = vld [vmem:[%s535 + $0x50] sm:$0xff]
        %v684 = vld [vmem:[%s535 + $0x58] sm:$0xff]
        %v685 = vld [vmem:[%s535 + $0x60] sm:$0xff]
        %v686 = vld [vmem:[%s535 + $0x68] sm:$0xff]
        %v687 = vld [vmem:[%s535 + $0x70] sm:$0xff]
        %v688 = vld [vmem:[%s535 + $0x78] sm:$0xff]
        %v689 = vld [vmem:[%s535 + $0x80] sm:$0xff]
        %v690 = vld [vmem:[%s535 + $0x88] sm:$0xff]
        %v691 = vld [vmem:[%s535 + $0x90] sm:$0xff]
        %v692 = vld [vmem:[%s535 + $0x98] sm:$0xff]
        %v693 = vld [vmem:[%s535 + $0xa0] sm:$0xff]
        %v694 = vld [vmem:[%s535 + $0xa8] sm:$0xff]
        %v695 = vld [vmem:[%s535 + $0xb0] sm:$0xff]
        %v696 = vld [vmem:[%s535 + $0xb8] sm:$0xff]
        %v697 = vld [vmem:[%s535 + $0xc0] sm:$0xff]
        %v698 = vld [vmem:[%s535 + $0xc8] sm:$0xff]
        %v699 = vld [vmem:[%s535 + $0xd0] sm:$0xff]
        %v700 = vld [vmem:[%s535 + $0xd8] sm:$0xff]
        %v701 = vld [vmem:[%s535 + $0xe0] sm:$0xff]
        %v702 = vld [vmem:[%s535 + $0xe8] sm:$0xff]
        %v703 = vld [vmem:[%s535 + $0xf0] sm:$0xff]
        %v704 = vld [vmem:[%s535 + $0xf8] sm:$0xff]
        %v705 = vld [vmem:[%s535 + $0x100] sm:$0xff]
        %v706 = vld [vmem:[%s535 + $0x108] sm:$0xff]
        %v707 = vld [vmem:[%s535 + $0x110] sm:$0xff]
        %v708 = vld [vmem:[%s535 + $0x118] sm:$0xff]
        %v709 = vld [vmem:[%s535 + $0x120] sm:$0xff]
        %v710 = vld [vmem:[%s535 + $0x128] sm:$0xff]
        %v711 = vld [vmem:[%s535 + $0x130] sm:$0xff]
        %v712 = vld [vmem:[%s535 + $0x138] sm:$0xff]
        %v713 = vld [vmem:[%s535 + $0x140] sm:$0xff]
        %v714 = vld [vmem:[%s535 + $0x148] sm:$0xff]
        %v715 = vld [vmem:[%s535 + $0x150] sm:$0xff]
        %v716 = vld [vmem:[%s535 + $0x158] sm:$0xff]
        %v717 = vld [vmem:[%s535 + $0x160] sm:$0xff]
        %v718 = vld [vmem:[%s535 + $0x168] sm:$0xff]
        %v719 = vld [vmem:[%s535 + $0x170] sm:$0xff]
        %v720 = vld [vmem:[%s535 + $0x178] sm:$0xff]
        %721 = vmatprep.subr.mxu0 %v719
        %722 = vmatpush1.msra.mxu0 %v718
        %723 = vmatprep.subr.mxu0 %v716
        %724 = vmatpush1.msra.mxu0 %v715
        %725 = vmatprep.subr.mxu0 %v713
        %726 = vmatpush1.msra.mxu0 %v712
        %727 = vmatprep.subr.mxu0 %v710
        %728 = vmatpush1.msra.mxu0 %v709
        %729 = vmatprep.subr.mxu0 %v707
        %730 = vmatpush1.msra.mxu0 %v706
        %731 = vmatprep.subr.mxu0 %v704
        %732 = vmatpush1.msra.mxu0 %v703
        %733 = vmatprep.subr.mxu0 %v701
        %734 = vmatpush1.msra.mxu0 %v700
        %735 = vmatprep.subr.mxu0 %v698
        %736 = vmatpush1.msra.mxu0 %v697
        %737 = vmatprep.subr.mxu0 %v695
        %738 = vmatpush1.msra.mxu0 %v694
        %739 = vmatprep.subr.mxu0 %v692
        %740 = vmatpush1.msra.mxu0 %v691
        %741 = vmatprep.subr.mxu0 %v689
        %742 = vmatpush1.msra.mxu0 %v688
        %743 = vmatprep.subr.mxu0 %v686
        %744 = vmatpush1.msra.mxu0 %v685
        %745 = vmatprep.subr.mxu0 %v683
        %746 = vmatpush1.msra.mxu0 %v682
        %747 = vmatprep.subr.mxu0 %v680
        %748 = vmatpush1.msra.mxu0 %v679
        %749 = vmatprep.subr.mxu0 %v677
        %750 = vmatpush1.msra.mxu0 %v676
        %751 = vmatprep.subr.mxu0 %v674
        %752 = vmatpush1.msra.mxu0 %v673
        %753 = vmatprep.subr.mxu0 0.0
        %754 = vmatpush2.msra.mxu0 0.0
        %755 = vmatprep.subr.mxu0 0.0
        %756 = vmatpush2.msra.mxu0 0.0
        %757 = vmatprep.subr.mxu0 0.0
        %758 = vmatpush2.msra.mxu0 0.0
        %759 = vmatprep.subr.mxu0 0.0
        %760 = vmatpush2.msra.mxu0 0.0
        %761 = vmatprep.subr.mxu0 0.0
        %762 = vmatpush2.msra.mxu0 0.0
        %763 = vmatprep.subr.mxu0 0.0
        %764 = vmatpush2.msra.mxu0 0.0
        %765 = vmatprep.subr.mxu0 0.0
        %766 = vmatpush2.msra.mxu0 0.0
        %767 = vmatprep.subr.mxu0 0.0
        %768 = vmatpush2.msra.mxu0 0.0
        %769 = vmatprep.subr.mxu0 0.0
        %770 = vmatpush2.msra.mxu0 0.0
        %771 = vmatprep.subr.mxu0 0.0
        %772 = vmatpush2.msra.mxu0 0.0
        %773 = vmatprep.subr.mxu0 0.0
        %774 = vmatpush2.msra.mxu0 0.0
        %775 = vmatprep.subr.mxu0 0.0
        %776 = vmatpush2.msra.mxu0 0.0
        %777 = vmatprep.subr.mxu0 0.0
        %778 = vmatpush2.msra.mxu0 0.0
        %779 = vmatprep.subr.mxu0 0.0
        %780 = vmatpush2.msra.mxu0 0.0
        %781 = vmatprep.subr.mxu0 0.0
        %782 = vmatpush2.msra.mxu0 0.0
        %783 = vmatprep.subr.mxu0 0.0
        %784 = vmatpush2.msra.mxu0 0.0
        %785 = vmatprep.mubr.f32.mxu0 0.0
        %786 = vmatmul.mubr.f32.gmra.mxu0 %v669
        %v787 = vpop.f32.mrf.mxu0
        %v788 = vadd.f32 0.0, %v787
        %v789 = vpop.f32.mrf.mxu0
        %v790 = vadd.f32 0.0, %v789
        %791 = vmatprep.mubr.f32.mxu0 0.0
        %792 = vmatmul.mubr.f32.gmra.mxu0 %v670
        %v793 = vpop.f32.mrf.mxu0
        %v794 = vadd.f32 0.0, %v793
        %v795 = vpop.f32.mrf.mxu0
        %v796 = vadd.f32 0.0, %v795
        %797 = vmatprep.mubr.f32.mxu0 0.0
        %798 = vmatmul.mubr.f32.gmra.mxu0 %v671
        %v799 = vpop.f32.mrf.mxu0
        %v800 = vadd.f32 0.0, %v799
        %v801 = vpop.f32.mrf.mxu0
        %v802 = vadd.f32 0.0, %v801
        %803 = vmatprep.mubr.f32.mxu0 0.0
        %804 = vmatmul.mubr.f32.gmra.mxu0 %v672
        %v805 = vpop.f32.mrf.mxu0
        %v806 = vadd.f32 0.0, %v805
        %v807 = vpop.f32.mrf.mxu0
        %v808 = vadd.f32 0.0, %v807
        %809 = vdwg.mxu0
        %810 = vmatprep.subr.mxu0 0.0
        %811 = vmatpush1.msra.mxu0 %v720
        %812 = vmatprep.subr.mxu0 0.0
        %813 = vmatpush1.msra.mxu0 %v717
        %814 = vmatprep.subr.mxu0 0.0
        %815 = vmatpush1.msra.mxu0 %v714
        %816 = vmatprep.subr.mxu0 0.0
        %817 = vmatpush1.msra.mxu0 %v711
        %818 = vmatprep.subr.mxu0 0.0
        %819 = vmatpush1.msra.mxu0 %v708
        %820 = vmatprep.subr.mxu0 0.0
        %821 = vmatpush1.msra.mxu0 %v705
        %822 = vmatprep.subr.mxu0 0.0
        %823 = vmatpush1.msra.mxu0 %v702
        %824 = vmatprep.subr.mxu0 0.0
        %825 = vmatpush1.msra.mxu0 %v699
        %826 = vmatprep.subr.mxu0 0.0
        %827 = vmatpush1.msra.mxu0 %v696
        %828 = vmatprep.subr.mxu0 0.0
        %829 = vmatpush1.msra.mxu0 %v693
        %830 = vmatprep.subr.mxu0 0.0
        %831 = vmatpush1.msra.mxu0 %v690
        %832 = vmatprep.subr.mxu0 0.0
        %833 = vmatpush1.msra.mxu0 %v687
        %834 = vmatprep.subr.mxu0 0.0
        %835 = vmatpush1.msra.mxu0 %v684
        %836 = vmatprep.subr.mxu0 0.0
        %837 = vmatpush1.msra.mxu0 %v681
        %838 = vmatprep.subr.mxu0 0.0
        %839 = vmatpush1.msra.mxu0 %v678
        %840 = vmatprep.subr.mxu0 0.0
        %841 = vmatpush1.msra.mxu0 %v675
        %842 = vmatprep.subr.mxu0 0.0
        %843 = vmatpush2.msra.mxu0 0.0
        %844 = vmatprep.subr.mxu0 0.0
        %845 = vmatpush2.msra.mxu0 0.0
        %846 = vmatprep.subr.mxu0 0.0
        %847 = vmatpush2.msra.mxu0 0.0
        %848 = vmatprep.subr.mxu0 0.0
        %849 = vmatpush2.msra.mxu0 0.0
        %850 = vmatprep.subr.mxu0 0.0
        %851 = vmatpush2.msra.mxu0 0.0
        %852 = vmatprep.subr.mxu0 0.0
        %853 = vmatpush2.msra.mxu0 0.0
        %854 = vmatprep.subr.mxu0 0.0
        %855 = vmatpush2.msra.mxu0 0.0
        %856 = vmatprep.subr.mxu0 0.0
        %857 = vmatpush2.msra.mxu0 0.0
        %858 = vmatprep.subr.mxu0 0.0
        %859 = vmatpush2.msra.mxu0 0.0
        %860 = vmatprep.subr.mxu0 0.0
        %861 = vmatpush2.msra.mxu0 0.0
        %862 = vmatprep.subr.mxu0 0.0
        %863 = vmatpush2.msra.mxu0 0.0
        %864 = vmatprep.subr.mxu0 0.0
        %865 = vmatpush2.msra.mxu0 0.0
        %866 = vmatprep.subr.mxu0 0.0
        %867 = vmatpush2.msra.mxu0 0.0
        %868 = vmatprep.subr.mxu0 0.0
        %869 = vmatpush2.msra.mxu0 0.0
        %870 = vmatprep.subr.mxu0 0.0
        %871 = vmatpush2.msra.mxu0 0.0
        %872 = vmatprep.subr.mxu0 0.0
        %873 = vmatpush2.msra.mxu0 0.0
        %874 = vmatprep.mubr.f32.mxu0 0.0
        %875 = vmatmul.mubr.f32.gmra.mxu0 %v669
        %v876 = vpop.f32.mrf.mxu0
        %v877 = vadd.f32 0.0, %v876
        %v878 = vpop.f32.mrf.mxu0
        %879 = vmatprep.mubr.f32.mxu0 0.0
        %880 = vmatmul.mubr.f32.gmra.mxu0 %v670
        %v881 = vpop.f32.mrf.mxu0
        %v882 = vadd.f32 0.0, %v881
        %v883 = vpop.f32.mrf.mxu0
        %884 = vmatprep.mubr.f32.mxu0 0.0
        %885 = vmatmul.mubr.f32.gmra.mxu0 %v671
        %v886 = vpop.f32.mrf.mxu0
        %v887 = vadd.f32 0.0, %v886
        %v888 = vpop.f32.mrf.mxu0
        %889 = vmatprep.mubr.f32.mxu0 0.0
        %890 = vmatmul.mubr.f32.gmra.mxu0 %v672
        %v891 = vpop.f32.mrf.mxu0
        %v892 = vadd.f32 0.0, %v891
        %v893 = vpop.f32.mrf.mxu0
        %894 = vdwg.mxu0
        %v895 = vmul.f32 %v788, 32.0
        %v896 = vmul.f32 %v794, 32.0
        %v897 = vmul.f32 %v800, 32.0
        %v898 = vmul.f32 %v806, 32.0
        %903 = vrot.lane.b32.xlu0 %v895, 64
        %v904 = vpop.permute.xlu0 %903
        %905 = vrot.lane.b32.xlu0 %v896, 64
        %v906 = vpop.permute.xlu0 %905
        %907 = vrot.lane.b32.xlu0 %v897, 64
        %v908 = vpop.permute.xlu0 %907
        %909 = vrot.lane.b32.xlu0 %v898, 64
        %v910 = vpop.permute.xlu0 %909
        %915 = vrot.lane.b32.xlu0 %v790, 64
        %v916 = vpop.permute.xlu0 %915
        %917 = vrot.lane.b32.xlu0 %v796, 64
        %v918 = vpop.permute.xlu0 %917
        %919 = vrot.lane.b32.xlu0 %v802, 64
        %v920 = vpop.permute.xlu0 %919
        %921 = vrot.lane.b32.xlu0 %v808, 64
        %v922 = vpop.permute.xlu0 %921
        %927 = vrot.lane.b32.xlu0 %v877, 64
        %v928 = vpop.permute.xlu0 %927
        %929 = vrot.lane.b32.xlu0 %v882, 64
        %v930 = vpop.permute.xlu0 %929
        %931 = vrot.lane.b32.xlu0 %v887, 64
        %v932 = vpop.permute.xlu0 %931
        %933 = vrot.lane.b32.xlu0 %v892, 64
        %v934 = vpop.permute.xlu0 %933
        %vm939 = vcmask 523264
        %v940 = vsel %vm939, %v895, 0
        %v942 = vsel %vm939, %v896, 0
        %v944 = vsel %vm939, %v790, 0
        %v946 = vsel %vm939, %v796, 0
        %948 = vmatprep.subr.mxu0 0.0
        %949 = vmatpush1.xpose.msra.mxu0 0.0
        %950 = vmatprep.subr.mxu0 0.0
        %951 = vmatpush1.xpose.msra.mxu0 0.0
        %952 = vmatprep.subr.mxu0 0.0
        %953 = vmatpush1.xpose.msra.mxu0 0.0
        %954 = vmatprep.subr.mxu0 0.0
        %955 = vmatpush1.xpose.msra.mxu0 0.0
        %956 = vmatprep.subr.mxu0 0.0
        %957 = vmatpush1.xpose.msra.mxu0 0.0
        %958 = vmatprep.subr.mxu0 0.0
        %959 = vmatpush1.xpose.msra.mxu0 0.0
        %960 = vmatprep.subr.mxu0 0.0
        %961 = vmatpush1.xpose.msra.mxu0 0.0
        %962 = vmatprep.subr.mxu0 0.0
        %963 = vmatpush1.xpose.msra.mxu0 0.0
        %964 = vmatprep.subr.mxu0 0.0
        %965 = vmatpush1.xpose.msra.mxu0 0.0
        %966 = vmatprep.subr.mxu0 0.0
        %967 = vmatpush1.xpose.msra.mxu0 0.0
        %968 = vmatprep.subr.mxu0 0.0
        %969 = vmatpush1.xpose.msra.mxu0 0.0
        %970 = vmatprep.subr.mxu0 0.0
        %971 = vmatpush1.xpose.msra.mxu0 0.0
        %972 = vmatprep.subr.mxu0 0.0
        %973 = vmatpush1.xpose.msra.mxu0 0.0
        %974 = vmatprep.subr.mxu0 0.0
        %975 = vmatpush1.xpose.msra.mxu0 0.0
        %976 = vmatprep.subr.mxu0 0.0
        %977 = vmatpush1.xpose.msra.mxu0 %v946
        %978 = vmatprep.subr.mxu0 0.0
        %979 = vmatpush1.xpose.msra.mxu0 %v944
        %980 = vmatprep.subr.mxu0 0.0
        %981 = vmatpush2.xpose.msra.mxu0 0.0
        %982 = vmatprep.subr.mxu0 0.0
        %983 = vmatpush2.xpose.msra.mxu0 0.0
        %984 = vmatprep.subr.mxu0 0.0
        %985 = vmatpush2.xpose.msra.mxu0 0.0
        %986 = vmatprep.subr.mxu0 0.0
        %987 = vmatpush2.xpose.msra.mxu0 0.0
        %988 = vmatprep.subr.mxu0 0.0
        %989 = vmatpush2.xpose.msra.mxu0 0.0
        %990 = vmatprep.subr.mxu0 0.0
        %991 = vmatpush2.xpose.msra.mxu0 0.0
        %992 = vmatprep.subr.mxu0 0.0
        %993 = vmatpush2.xpose.msra.mxu0 0.0
        %994 = vmatprep.subr.mxu0 0.0
        %995 = vmatpush2.xpose.msra.mxu0 0.0
        %996 = vmatprep.subr.mxu0 0.0
        %997 = vmatpush2.xpose.msra.mxu0 0.0
        %998 = vmatprep.subr.mxu0 0.0
        %999 = vmatpush2.xpose.msra.mxu0 0.0
        %1000 = vmatprep.subr.mxu0 0.0
        %1001 = vmatpush2.xpose.msra.mxu0 0.0
        %1002 = vmatprep.subr.mxu0 0.0
        %1003 = vmatpush2.xpose.msra.mxu0 0.0
        %1004 = vmatprep.subr.mxu0 0.0
        %1005 = vmatpush2.xpose.msra.mxu0 0.0
        %1006 = vmatprep.subr.mxu0 0.0
        %1007 = vmatpush2.xpose.msra.mxu0 0.0
        %1008 = vmatprep.subr.mxu0 0.0
        %1009 = vmatpush2.xpose.msra.mxu0 0.0
        %1010 = vmatprep.subr.mxu0 0.0
        %1011 = vmatpush2.xpose.msra.mxu0 0.0
        %1012 = vmatprep.mubr.f32.mxu0 0.0
        %1013 = vmatmul.mubr.f32.gmra.mxu0 %v940
        %v1014 = vpop.f32.mrf.mxu0
        %v1015 = vadd.f32 0.0, %v1014
        %v1016 = vpop.f32.mrf.mxu0
        %1017 = vmatprep.mubr.f32.mxu0 0.0
        %1018 = vmatmul.mubr.f32.gmra.mxu0 %v942
        %v1019 = vpop.f32.mrf.mxu0
        %v1020 = vadd.f32 0.0, %v1019
        %v1021 = vpop.f32.mrf.mxu0
        %1022 = vdwg.mxu0
        %v1023 = vsel %vm939, %v897, 0
        %v1025 = vsel %vm939, %v898, 0
        %v1027 = vsel %vm939, %v802, 0
        %v1029 = vsel %vm939, %v808, 0
        %1031 = vmatprep.subr.mxu0 0.0
        %1032 = vmatpush1.xpose.msra.mxu0 0.0
        %1033 = vmatprep.subr.mxu0 0.0
        %1034 = vmatpush1.xpose.msra.mxu0 0.0
        %1035 = vmatprep.subr.mxu0 0.0
        %1036 = vmatpush1.xpose.msra.mxu0 0.0
        %1037 = vmatprep.subr.mxu0 0.0
        %1038 = vmatpush1.xpose.msra.mxu0 0.0
        %1039 = vmatprep.subr.mxu0 0.0
        %1040 = vmatpush1.xpose.msra.mxu0 0.0
        %1041 = vmatprep.subr.mxu0 0.0
        %1042 = vmatpush1.xpose.msra.mxu0 0.0
        %1043 = vmatprep.subr.mxu0 0.0
        %1044 = vmatpush1.xpose.msra.mxu0 0.0
        %1045 = vmatprep.subr.mxu0 0.0
        %1046 = vmatpush1.xpose.msra.mxu0 0.0
        %1047 = vmatprep.subr.mxu0 0.0
        %1048 = vmatpush1.xpose.msra.mxu0 0.0
        %1049 = vmatprep.subr.mxu0 0.0
        %1050 = vmatpush1.xpose.msra.mxu0 0.0
        %1051 = vmatprep.subr.mxu0 0.0
        %1052 = vmatpush1.xpose.msra.mxu0 0.0
        %1053 = vmatprep.subr.mxu0 0.0
        %1054 = vmatpush1.xpose.msra.mxu0 0.0
        %1055 = vmatprep.subr.mxu0 0.0
        %1056 = vmatpush1.xpose.msra.mxu0 0.0
        %1057 = vmatprep.subr.mxu0 0.0
        %1058 = vmatpush1.xpose.msra.mxu0 0.0
        %1059 = vmatprep.subr.mxu0 0.0
        %1060 = vmatpush1.xpose.msra.mxu0 %v1029
        %1061 = vmatprep.subr.mxu0 0.0
        %1062 = vmatpush1.xpose.msra.mxu0 %v1027
        %1063 = vmatprep.subr.mxu0 0.0
        %1064 = vmatpush2.xpose.msra.mxu0 0.0
        %1065 = vmatprep.subr.mxu0 0.0
        %1066 = vmatpush2.xpose.msra.mxu0 0.0
        %1067 = vmatprep.subr.mxu0 0.0
        %1068 = vmatpush2.xpose.msra.mxu0 0.0
        %1069 = vmatprep.subr.mxu0 0.0
        %1070 = vmatpush2.xpose.msra.mxu0 0.0
        %1071 = vmatprep.subr.mxu0 0.0
        %1072 = vmatpush2.xpose.msra.mxu0 0.0
        %1073 = vmatprep.subr.mxu0 0.0
        %1074 = vmatpush2.xpose.msra.mxu0 0.0
        %1075 = vmatprep.subr.mxu0 0.0
        %1076 = vmatpush2.xpose.msra.mxu0 0.0
        %1077 = vmatprep.subr.mxu0 0.0
        %1078 = vmatpush2.xpose.msra.mxu0 0.0
        %1079 = vmatprep.subr.mxu0 0.0
        %1080 = vmatpush2.xpose.msra.mxu0 0.0
        %1081 = vmatprep.subr.mxu0 0.0
        %1082 = vmatpush2.xpose.msra.mxu0 0.0
        %1083 = vmatprep.subr.mxu0 0.0
        %1084 = vmatpush2.xpose.msra.mxu0 0.0
        %1085 = vmatprep.subr.mxu0 0.0
        %1086 = vmatpush2.xpose.msra.mxu0 0.0
        %1087 = vmatprep.subr.mxu0 0.0
        %1088 = vmatpush2.xpose.msra.mxu0 0.0
        %1089 = vmatprep.subr.mxu0 0.0
        %1090 = vmatpush2.xpose.msra.mxu0 0.0
        %1091 = vmatprep.subr.mxu0 0.0
        %1092 = vmatpush2.xpose.msra.mxu0 0.0
        %1093 = vmatprep.subr.mxu0 0.0
        %1094 = vmatpush2.xpose.msra.mxu0 0.0
        %1095 = vmatprep.mubr.f32.mxu0 0.0
        %1096 = vmatmul.mubr.f32.gmra.mxu0 %v1023
        %v1097 = vpop.f32.mrf.mxu0
        %v1098 = vadd.f32 0.0, %v1097
        %v1099 = vpop.f32.mrf.mxu0
        %1100 = vmatprep.mubr.f32.mxu0 0.0
        %1101 = vmatmul.mubr.f32.gmra.mxu0 %v1025
        %v1102 = vpop.f32.mrf.mxu0
        %v1103 = vadd.f32 0.0, %v1102
        %v1104 = vpop.f32.mrf.mxu0
        %1105 = vdwg.mxu0
        %v1106 = vsel %vm939, %v904, 0
        %v1108 = vsel %vm939, %v906, 0
        %v1110 = vsel %vm939, %v916, 0
        %v1112 = vsel %vm939, %v918, 0
        %1114 = vmatprep.subr.mxu0 0.0
        %1115 = vmatpush1.xpose.msra.mxu0 0.0
        %1116 = vmatprep.subr.mxu0 0.0
        %1117 = vmatpush1.xpose.msra.mxu0 0.0
        %1118 = vmatprep.subr.mxu0 0.0
        %1119 = vmatpush1.xpose.msra.mxu0 0.0
        %1120 = vmatprep.subr.mxu0 0.0
        %1121 = vmatpush1.xpose.msra.mxu0 0.0
        %1122 = vmatprep.subr.mxu0 0.0
        %1123 = vmatpush1.xpose.msra.mxu0 0.0
        %1124 = vmatprep.subr.mxu0 0.0
        %1125 = vmatpush1.xpose.msra.mxu0 0.0
        %1126 = vmatprep.subr.mxu0 0.0
        %1127 = vmatpush1.xpose.msra.mxu0 0.0
        %1128 = vmatprep.subr.mxu0 0.0
        %1129 = vmatpush1.xpose.msra.mxu0 0.0
        %1130 = vmatprep.subr.mxu0 0.0
        %1131 = vmatpush1.xpose.msra.mxu0 0.0
        %1132 = vmatprep.subr.mxu0 0.0
        %1133 = vmatpush1.xpose.msra.mxu0 0.0
        %1134 = vmatprep.subr.mxu0 0.0
        %1135 = vmatpush1.xpose.msra.mxu0 0.0
        %1136 = vmatprep.subr.mxu0 0.0
        %1137 = vmatpush1.xpose.msra.mxu0 0.0
        %1138 = vmatprep.subr.mxu0 0.0
        %1139 = vmatpush1.xpose.msra.mxu0 0.0
        %1140 = vmatprep.subr.mxu0 0.0
        %1141 = vmatpush1.xpose.msra.mxu0 0.0
        %1142 = vmatprep.subr.mxu0 0.0
        %1143 = vmatpush1.xpose.msra.mxu0 %v1112
        %1144 = vmatprep.subr.mxu0 0.0
        %1145 = vmatpush1.xpose.msra.mxu0 %v1110
        %1146 = vmatprep.subr.mxu0 0.0
        %1147 = vmatpush2.xpose.msra.mxu0 0.0
        %1148 = vmatprep.subr.mxu0 0.0
        %1149 = vmatpush2.xpose.msra.mxu0 0.0
        %1150 = vmatprep.subr.mxu0 0.0
        %1151 = vmatpush2.xpose.msra.mxu0 0.0
        %1152 = vmatprep.subr.mxu0 0.0
        %1153 = vmatpush2.xpose.msra.mxu0 0.0
        %1154 = vmatprep.subr.mxu0 0.0
        %1155 = vmatpush2.xpose.msra.mxu0 0.0
        %1156 = vmatprep.subr.mxu0 0.0
        %1157 = vmatpush2.xpose.msra.mxu0 0.0
        %1158 = vmatprep.subr.mxu0 0.0
        %1159 = vmatpush2.xpose.msra.mxu0 0.0
        %1160 = vmatprep.subr.mxu0 0.0
        %1161 = vmatpush2.xpose.msra.mxu0 0.0
        %1162 = vmatprep.subr.mxu0 0.0
        %1163 = vmatpush2.xpose.msra.mxu0 0.0
        %1164 = vmatprep.subr.mxu0 0.0
        %1165 = vmatpush2.xpose.msra.mxu0 0.0
        %1166 = vmatprep.subr.mxu0 0.0
        %1167 = vmatpush2.xpose.msra.mxu0 0.0
        %1168 = vmatprep.subr.mxu0 0.0
        %1169 = vmatpush2.xpose.msra.mxu0 0.0
        %1170 = vmatprep.subr.mxu0 0.0
        %1171 = vmatpush2.xpose.msra.mxu0 0.0
        %1172 = vmatprep.subr.mxu0 0.0
        %1173 = vmatpush2.xpose.msra.mxu0 0.0
        %1174 = vmatprep.subr.mxu0 0.0
        %1175 = vmatpush2.xpose.msra.mxu0 0.0
        %1176 = vmatprep.subr.mxu0 0.0
        %1177 = vmatpush2.xpose.msra.mxu0 0.0
        %1178 = vmatprep.mubr.f32.mxu0 0.0
        %1179 = vmatmul.mubr.f32.gmra.mxu0 %v1106
        %v1180 = vpop.f32.mrf.mxu0
        %v1181 = vadd.f32 0.0, %v1180
        %v1182 = vpop.f32.mrf.mxu0
        %1183 = vmatprep.mubr.f32.mxu0 0.0
        %1184 = vmatmul.mubr.f32.gmra.mxu0 %v1108
        %v1185 = vpop.f32.mrf.mxu0
        %v1186 = vadd.f32 0.0, %v1185
        %v1187 = vpop.f32.mrf.mxu0
        %1188 = vdwg.mxu0
        %v1189 = vsel %vm939, %v908, 0
        %v1191 = vsel %vm939, %v910, 0
        %v1193 = vsel %vm939, %v920, 0
        %v1195 = vsel %vm939, %v922, 0
        %1197 = vmatprep.subr.mxu0 0.0
        %1198 = vmatpush1.xpose.msra.mxu0 0.0
        %1199 = vmatprep.subr.mxu0 0.0
        %1200 = vmatpush1.xpose.msra.mxu0 0.0
        %1201 = vmatprep.subr.mxu0 0.0
        %1202 = vmatpush1.xpose.msra.mxu0 0.0
        %1203 = vmatprep.subr.mxu0 0.0
        %1204 = vmatpush1.xpose.msra.mxu0 0.0
        %1205 = vmatprep.subr.mxu0 0.0
        %1206 = vmatpush1.xpose.msra.mxu0 0.0
        %1207 = vmatprep.subr.mxu0 0.0
        %1208 = vmatpush1.xpose.msra.mxu0 0.0
        %1209 = vmatprep.subr.mxu0 0.0
        %1210 = vmatpush1.xpose.msra.mxu0 0.0
        %1211 = vmatprep.subr.mxu0 0.0
        %1212 = vmatpush1.xpose.msra.mxu0 0.0
        %1213 = vmatprep.subr.mxu0 0.0
        %1214 = vmatpush1.xpose.msra.mxu0 0.0
        %1215 = vmatprep.subr.mxu0 0.0
        %1216 = vmatpush1.xpose.msra.mxu0 0.0
        %1217 = vmatprep.subr.mxu0 0.0
        %1218 = vmatpush1.xpose.msra.mxu0 0.0
        %1219 = vmatprep.subr.mxu0 0.0
        %1220 = vmatpush1.xpose.msra.mxu0 0.0
        %1221 = vmatprep.subr.mxu0 0.0
        %1222 = vmatpush1.xpose.msra.mxu0 0.0
        %1223 = vmatprep.subr.mxu0 0.0
        %1224 = vmatpush1.xpose.msra.mxu0 0.0
        %1225 = vmatprep.subr.mxu0 0.0
        %1226 = vmatpush1.xpose.msra.mxu0 %v1195
        %1227 = vmatprep.subr.mxu0 0.0
        %1228 = vmatpush1.xpose.msra.mxu0 %v1193
        %1229 = vmatprep.subr.mxu0 0.0
        %1230 = vmatpush2.xpose.msra.mxu0 0.0
        %1231 = vmatprep.subr.mxu0 0.0
        %1232 = vmatpush2.xpose.msra.mxu0 0.0
        %1233 = vmatprep.subr.mxu0 0.0
        %1234 = vmatpush2.xpose.msra.mxu0 0.0
        %1235 = vmatprep.subr.mxu0 0.0
        %1236 = vmatpush2.xpose.msra.mxu0 0.0
        %1237 = vmatprep.subr.mxu0 0.0
        %1238 = vmatpush2.xpose.msra.mxu0 0.0
        %1239 = vmatprep.subr.mxu0 0.0
        %1240 = vmatpush2.xpose.msra.mxu0 0.0
        %1241 = vmatprep.subr.mxu0 0.0
        %1242 = vmatpush2.xpose.msra.mxu0 0.0
        %1243 = vmatprep.subr.mxu0 0.0
        %1244 = vmatpush2.xpose.msra.mxu0 0.0
        %1245 = vmatprep.subr.mxu0 0.0
        %1246 = vmatpush2.xpose.msra.mxu0 0.0
        %1247 = vmatprep.subr.mxu0 0.0
        %1248 = vmatpush2.xpose.msra.mxu0 0.0
        %1249 = vmatprep.subr.mxu0 0.0
        %1250 = vmatpush2.xpose.msra.mxu0 0.0
        %1251 = vmatprep.subr.mxu0 0.0
        %1252 = vmatpush2.xpose.msra.mxu0 0.0
        %1253 = vmatprep.subr.mxu0 0.0
        %1254 = vmatpush2.xpose.msra.mxu0 0.0
        %1255 = vmatprep.subr.mxu0 0.0
        %1256 = vmatpush2.xpose.msra.mxu0 0.0
        %1257 = vmatprep.subr.mxu0 0.0
        %1258 = vmatpush2.xpose.msra.mxu0 0.0
        %1259 = vmatprep.subr.mxu0 0.0
        %1260 = vmatpush2.xpose.msra.mxu0 0.0
        %1261 = vmatprep.mubr.f32.mxu0 0.0
        %1262 = vmatmul.mubr.f32.gmra.mxu0 %v1189
        %v1263 = vpop.f32.mrf.mxu0
        %v1264 = vadd.f32 0.0, %v1263
        %v1265 = vpop.f32.mrf.mxu0
        %1266 = vmatprep.mubr.f32.mxu0 0.0
        %1267 = vmatmul.mubr.f32.gmra.mxu0 %v1191
        %v1268 = vpop.f32.mrf.mxu0
        %v1269 = vadd.f32 0.0, %v1268
        %v1270 = vpop.f32.mrf.mxu0
        %1271 = vdwg.mxu0
        %vm1272 = vcmask 130048
        %v1273 = vsel %vm1272, %v1015, -inf
        %1274 = vmax.xlane.f32.xlu0 %v1273
        %v1275 = vpop.xlane.xlu0 %1274
        %v1276 = vsel %vm1272, %v1020, -inf
        %1277 = vmax.xlane.f32.xlu0 %v1276
        %v1278 = vpop.xlane.xlu0 %1277
        %v1279 = vsel %vm1272, %v1098, -inf
        %1280 = vmax.xlane.f32.xlu0 %v1279
        %v1281 = vpop.xlane.xlu0 %1280
        %v1282 = vsel %vm1272, %v1103, -inf
        %1283 = vmax.xlane.f32.xlu0 %v1282
        %v1284 = vpop.xlane.xlu0 %1283
        %v1285 = vsel %vm1272, %v1181, -inf
        %1286 = vmax.xlane.f32.xlu0 %v1285
        %v1287 = vpop.xlane.xlu0 %1286
        %v1288 = vsel %vm1272, %v1186, -inf
        %1289 = vmax.xlane.f32.xlu0 %v1288
        %v1290 = vpop.xlane.xlu0 %1289
        %v1291 = vsel %vm1272, %v1264, -inf
        %1292 = vmax.xlane.f32.xlu0 %v1291
        %v1293 = vpop.xlane.xlu0 %1292
        %v1294 = vsel %vm1272, %v1269, -inf
        %1295 = vmax.xlane.f32.xlu0 %v1294
        %v1296 = vpop.xlane.xlu0 %1295
        %v1297 = vsub.f32 %v1015, %v1275
        %v1298 = vsub.f32 %v1020, %v1278
        %v1299 = vsub.f32 %v1098, %v1281
        %v1300 = vsub.f32 %v1103, %v1284
        %v1301 = vsub.f32 %v1181, %v1287
        %v1302 = vsub.f32 %v1186, %v1290
        %v1303 = vsub.f32 %v1264, %v1293
        %v1304 = vsub.f32 %v1269, %v1296
        %v1305 = vmul.f32 %v1297, 1.442695
        %v1306 = vpow.pop %v1305
        %v1307 = vmul.f32 %v1298, 1.442695
        %v1308 = vpow.pop %v1307
        %v1309 = vmul.f32 %v1299, 1.442695
        %v1310 = vpow.pop %v1309
        %v1311 = vmul.f32 %v1300, 1.442695
        %v1312 = vpow.pop %v1311
        %v1313 = vmul.f32 %v1301, 1.442695
        %v1314 = vpow.pop %v1313
        %v1315 = vmul.f32 %v1302, 1.442695
        %v1316 = vpow.pop %v1315
        %v1317 = vmul.f32 %v1303, 1.442695
        %v1318 = vpow.pop %v1317
        %v1319 = vmul.f32 %v1304, 1.442695
        %v1320 = vpow.pop %v1319
        %v1321 = vsel %vm1272, %v1306, 0.0
        %1322 = vadd.xlane.f32.xlu0 %v1321
        %v1323 = vpop.xlane.xlu0 %1322
        %v1324 = vsel %vm1272, %v1308, 0.0
        %1325 = vadd.xlane.f32.xlu0 %v1324
        %v1326 = vpop.xlane.xlu0 %1325
        %v1327 = vsel %vm1272, %v1310, 0.0
        %1328 = vadd.xlane.f32.xlu0 %v1327
        %v1329 = vpop.xlane.xlu0 %1328
        %v1330 = vsel %vm1272, %v1312, 0.0
        %1331 = vadd.xlane.f32.xlu0 %v1330
        %v1332 = vpop.xlane.xlu0 %1331
        %v1333 = vsel %vm1272, %v1314, 0.0
        %1334 = vadd.xlane.f32.xlu0 %v1333
        %v1335 = vpop.xlane.xlu0 %1334
        %v1336 = vsel %vm1272, %v1316, 0.0
        %1337 = vadd.xlane.f32.xlu0 %v1336
        %v1338 = vpop.xlane.xlu0 %1337
        %v1339 = vsel %vm1272, %v1318, 0.0
        %1340 = vadd.xlane.f32.xlu0 %v1339
        %v1341 = vpop.xlane.xlu0 %1340
        %v1342 = vsel %vm1272, %v1320, 0.0
        %1343 = vadd.xlane.f32.xlu0 %v1342
        %v1344 = vpop.xlane.xlu0 %1343
        %v1345 = vrcp.pop %v1323
        %v1346 = vrcp.pop %v1326
        %v1347 = vrcp.pop %v1329
        %v1348 = vrcp.pop %v1332
        %v1349 = vrcp.pop %v1335
        %v1350 = vrcp.pop %v1338
        %v1351 = vrcp.pop %v1341
        %v1352 = vrcp.pop %v1344
        %v1353 = vmul.f32 %v1306, %v1345
        %v1354 = vmul.f32 %v1308, %v1346
        %v1355 = vmul.f32 %v1310, %v1347
        %v1356 = vmul.f32 %v1312, %v1348
        %v1357 = vmul.f32 %v1314, %v1349
        %v1358 = vmul.f32 %v1316, %v1350
        %v1359 = vmul.f32 %v1318, %v1351
        %v1360 = vmul.f32 %v1320, %v1352
        %v1362 = vsel %vm1272, %v1353, 0
        %v1365 = vsel %vm1272, %v1354, 0
        %1367 = vmatprep.subr.mxu0 0.0
        %1368 = vmatpush1.msra.mxu0 0.0
        %1369 = vmatprep.subr.mxu0 0.0
        %1370 = vmatpush1.msra.mxu0 0.0
        %1371 = vmatprep.subr.mxu0 0.0
        %1372 = vmatpush1.msra.mxu0 0.0
        %1373 = vmatprep.subr.mxu0 0.0
        %1374 = vmatpush1.msra.mxu0 0.0
        %1375 = vmatprep.subr.mxu0 0.0
        %1376 = vmatpush1.msra.mxu0 0.0
        %1377 = vmatprep.subr.mxu0 0.0
        %1378 = vmatpush1.msra.mxu0 0.0
        %1379 = vmatprep.subr.mxu0 0.0
        %1380 = vmatpush1.msra.mxu0 0.0
        %1381 = vmatprep.subr.mxu0 0.0
        %1382 = vmatpush1.msra.mxu0 0.0
        %1383 = vmatprep.subr.mxu0 0.0
        %1384 = vmatpush1.msra.mxu0 0.0
        %1385 = vmatprep.subr.mxu0 0.0
        %1386 = vmatpush1.msra.mxu0 0.0
        %1387 = vmatprep.subr.mxu0 0.0
        %1388 = vmatpush1.msra.mxu0 0.0
        %1389 = vmatprep.subr.mxu0 0.0
        %1390 = vmatpush1.msra.mxu0 0.0
        %1391 = vmatprep.subr.mxu0 0.0
        %1392 = vmatpush1.msra.mxu0 0.0
        %1393 = vmatprep.subr.mxu0 0.0
        %1394 = vmatpush1.msra.mxu0 0.0
        %1395 = vmatprep.subr.mxu0 0.0
        %1396 = vmatpush1.msra.mxu0 %v882
        %1397 = vmatprep.subr.mxu0 0.0
        %1398 = vmatpush1.msra.mxu0 %v877
        %1399 = vmatprep.subr.mxu0 0.0
        %1400 = vmatpush2.msra.mxu0 0.0
        %1401 = vmatprep.subr.mxu0 0.0
        %1402 = vmatpush2.msra.mxu0 0.0
        %1403 = vmatprep.subr.mxu0 0.0
        %1404 = vmatpush2.msra.mxu0 0.0
        %1405 = vmatprep.subr.mxu0 0.0
        %1406 = vmatpush2.msra.mxu0 0.0
        %1407 = vmatprep.subr.mxu0 0.0
        %1408 = vmatpush2.msra.mxu0 0.0
        %1409 = vmatprep.subr.mxu0 0.0
        %1410 = vmatpush2.msra.mxu0 0.0
        %1411 = vmatprep.subr.mxu0 0.0
        %1412 = vmatpush2.msra.mxu0 0.0
        %1413 = vmatprep.subr.mxu0 0.0
        %1414 = vmatpush2.msra.mxu0 0.0
        %1415 = vmatprep.subr.mxu0 0.0
        %1416 = vmatpush2.msra.mxu0 0.0
        %1417 = vmatprep.subr.mxu0 0.0
        %1418 = vmatpush2.msra.mxu0 0.0
        %1419 = vmatprep.subr.mxu0 0.0
        %1420 = vmatpush2.msra.mxu0 0.0
        %1421 = vmatprep.subr.mxu0 0.0
        %1422 = vmatpush2.msra.mxu0 0.0
        %1423 = vmatprep.subr.mxu0 0.0
        %1424 = vmatpush2.msra.mxu0 0.0
        %1425 = vmatprep.subr.mxu0 0.0
        %1426 = vmatpush2.msra.mxu0 0.0
        %1427 = vmatprep.subr.mxu0 0.0
        %1428 = vmatpush2.msra.mxu0 0.0
        %1429 = vmatprep.subr.mxu0 0.0
        %1430 = vmatpush2.msra.mxu0 0.0
        %1431 = vmatprep.mubr.f32.mxu0 0.0
        %1432 = vmatmul.mubr.f32.gmra.mxu0 %v1362
        %v1433 = vpop.f32.mrf.mxu0
        %v1434 = vadd.f32 0.0, %v1433
        %v1435 = vpop.f32.mrf.mxu0
        %1436 = vmatprep.mubr.f32.mxu0 0.0
        %1437 = vmatmul.mubr.f32.gmra.mxu0 %v1365
        %v1438 = vpop.f32.mrf.mxu0
        %v1439 = vadd.f32 0.0, %v1438
        %v1440 = vpop.f32.mrf.mxu0
        %1441 = vdwg.mxu0
        %v1443 = vsel %vm1272, %v1355, 0
        %v1446 = vsel %vm1272, %v1356, 0
        %1448 = vmatprep.subr.mxu0 0.0
        %1449 = vmatpush1.msra.mxu0 0.0
        %1450 = vmatprep.subr.mxu0 0.0
        %1451 = vmatpush1.msra.mxu0 0.0
        %1452 = vmatprep.subr.mxu0 0.0
        %1453 = vmatpush1.msra.mxu0 0.0
        %1454 = vmatprep.subr.mxu0 0.0
        %1455 = vmatpush1.msra.mxu0 0.0
        %1456 = vmatprep.subr.mxu0 0.0
        %1457 = vmatpush1.msra.mxu0 0.0
        %1458 = vmatprep.subr.mxu0 0.0
        %1459 = vmatpush1.msra.mxu0 0.0
        %1460 = vmatprep.subr.mxu0 0.0
        %1461 = vmatpush1.msra.mxu0 0.0
        %1462 = vmatprep.subr.mxu0 0.0
        %1463 = vmatpush1.msra.mxu0 0.0
        %1464 = vmatprep.subr.mxu0 0.0
        %1465 = vmatpush1.msra.mxu0 0.0
        %1466 = vmatprep.subr.mxu0 0.0
        %1467 = vmatpush1.msra.mxu0 0.0
        %1468 = vmatprep.subr.mxu0 0.0
        %1469 = vmatpush1.msra.mxu0 0.0
        %1470 = vmatprep.subr.mxu0 0.0
        %1471 = vmatpush1.msra.mxu0 0.0
        %1472 = vmatprep.subr.mxu0 0.0
        %1473 = vmatpush1.msra.mxu0 0.0
        %1474 = vmatprep.subr.mxu0 0.0
        %1475 = vmatpush1.msra.mxu0 0.0
        %1476 = vmatprep.subr.mxu0 0.0
        %1477 = vmatpush1.msra.mxu0 %v892
        %1478 = vmatprep.subr.mxu0 0.0
        %1479 = vmatpush1.msra.mxu0 %v887
        %1480 = vmatprep.subr.mxu0 0.0
        %1481 = vmatpush2.msra.mxu0 0.0
        %1482 = vmatprep.subr.mxu0 0.0
        %1483 = vmatpush2.msra.mxu0 0.0
        %1484 = vmatprep.subr.mxu0 0.0
        %1485 = vmatpush2.msra.mxu0 0.0
        %1486 = vmatprep.subr.mxu0 0.0
        %1487 = vmatpush2.msra.mxu0 0.0
        %1488 = vmatprep.subr.mxu0 0.0
        %1489 = vmatpush2.msra.mxu0 0.0
        %1490 = vmatprep.subr.mxu0 0.0
        %1491 = vmatpush2.msra.mxu0 0.0
        %1492 = vmatprep.subr.mxu0 0.0
        %1493 = vmatpush2.msra.mxu0 0.0
        %1494 = vmatprep.subr.mxu0 0.0
        %1495 = vmatpush2.msra.mxu0 0.0
        %1496 = vmatprep.subr.mxu0 0.0
        %1497 = vmatpush2.msra.mxu0 0.0
        %1498 = vmatprep.subr.mxu0 0.0
        %1499 = vmatpush2.msra.mxu0 0.0
        %1500 = vmatprep.subr.mxu0 0.0
        %1501 = vmatpush2.msra.mxu0 0.0
        %1502 = vmatprep.subr.mxu0 0.0
        %1503 = vmatpush2.msra.mxu0 0.0
        %1504 = vmatprep.subr.mxu0 0.0
        %1505 = vmatpush2.msra.mxu0 0.0
        %1506 = vmatprep.subr.mxu0 0.0
        %1507 = vmatpush2.msra.mxu0 0.0
        %1508 = vmatprep.subr.mxu0 0.0
        %1509 = vmatpush2.msra.mxu0 0.0
        %1510 = vmatprep.subr.mxu0 0.0
        %1511 = vmatpush2.msra.mxu0 0.0
        %1512 = vmatprep.mubr.f32.mxu0 0.0
        %1513 = vmatmul.mubr.f32.gmra.mxu0 %v1443
        %v1514 = vpop.f32.mrf.mxu0
        %v1515 = vadd.f32 0.0, %v1514
        %v1516 = vpop.f32.mrf.mxu0
        %1517 = vmatprep.mubr.f32.mxu0 0.0
        %1518 = vmatmul.mubr.f32.gmra.mxu0 %v1446
        %v1519 = vpop.f32.mrf.mxu0
        %v1520 = vadd.f32 0.0, %v1519
        %v1521 = vpop.f32.mrf.mxu0
        %1522 = vdwg.mxu0
        %v1524 = vsel %vm1272, %v1357, 0
        %v1527 = vsel %vm1272, %v1358, 0
        %1529 = vmatprep.subr.mxu0 0.0
        %1530 = vmatpush1.msra.mxu0 0.0
        %1531 = vmatprep.subr.mxu0 0.0
        %1532 = vmatpush1.msra.mxu0 0.0
        %1533 = vmatprep.subr.mxu0 0.0
        %1534 = vmatpush1.msra.mxu0 0.0
        %1535 = vmatprep.subr.mxu0 0.0
        %1536 = vmatpush1.msra.mxu0 0.0
        %1537 = vmatprep.subr.mxu0 0.0
        %1538 = vmatpush1.msra.mxu0 0.0
        %1539 = vmatprep.subr.mxu0 0.0
        %1540 = vmatpush1.msra.mxu0 0.0
        %1541 = vmatprep.subr.mxu0 0.0
        %1542 = vmatpush1.msra.mxu0 0.0
        %1543 = vmatprep.subr.mxu0 0.0
        %1544 = vmatpush1.msra.mxu0 0.0
        %1545 = vmatprep.subr.mxu0 0.0
        %1546 = vmatpush1.msra.mxu0 0.0
        %1547 = vmatprep.subr.mxu0 0.0
        %1548 = vmatpush1.msra.mxu0 0.0
        %1549 = vmatprep.subr.mxu0 0.0
        %1550 = vmatpush1.msra.mxu0 0.0
        %1551 = vmatprep.subr.mxu0 0.0
        %1552 = vmatpush1.msra.mxu0 0.0
        %1553 = vmatprep.subr.mxu0 0.0
        %1554 = vmatpush1.msra.mxu0 0.0
        %1555 = vmatprep.subr.mxu0 0.0
        %1556 = vmatpush1.msra.mxu0 0.0
        %1557 = vmatprep.subr.mxu0 0.0
        %1558 = vmatpush1.msra.mxu0 %v930
        %1559 = vmatprep.subr.mxu0 0.0
        %1560 = vmatpush1.msra.mxu0 %v928
        %1561 = vmatprep.subr.mxu0 0.0
        %1562 = vmatpush2.msra.mxu0 0.0
        %1563 = vmatprep.subr.mxu0 0.0
        %1564 = vmatpush2.msra.mxu0 0.0
        %1565 = vmatprep.subr.mxu0 0.0
        %1566 = vmatpush2.msra.mxu0 0.0
        %1567 = vmatprep.subr.mxu0 0.0
        %1568 = vmatpush2.msra.mxu0 0.0
        %1569 = vmatprep.subr.mxu0 0.0
        %1570 = vmatpush2.msra.mxu0 0.0
        %1571 = vmatprep.subr.mxu0 0.0
        %1572 = vmatpush2.msra.mxu0 0.0
        %1573 = vmatprep.subr.mxu0 0.0
        %1574 = vmatpush2.msra.mxu0 0.0
        %1575 = vmatprep.subr.mxu0 0.0
        %1576 = vmatpush2.msra.mxu0 0.0
        %1577 = vmatprep.subr.mxu0 0.0
        %1578 = vmatpush2.msra.mxu0 0.0
        %1579 = vmatprep.subr.mxu0 0.0
        %1580 = vmatpush2.msra.mxu0 0.0
        %1581 = vmatprep.subr.mxu0 0.0
        %1582 = vmatpush2.msra.mxu0 0.0
        %1583 = vmatprep.subr.mxu0 0.0
        %1584 = vmatpush2.msra.mxu0 0.0
        %1585 = vmatprep.subr.mxu0 0.0
        %1586 = vmatpush2.msra.mxu0 0.0
        %1587 = vmatprep.subr.mxu0 0.0
        %1588 = vmatpush2.msra.mxu0 0.0
        %1589 = vmatprep.subr.mxu0 0.0
        %1590 = vmatpush2.msra.mxu0 0.0
        %1591 = vmatprep.subr.mxu0 0.0
        %1592 = vmatpush2.msra.mxu0 0.0
        %1593 = vmatprep.mubr.f32.mxu0 0.0
        %1594 = vmatmul.mubr.f32.gmra.mxu0 %v1524
        %v1595 = vpop.f32.mrf.mxu0
        %v1596 = vadd.f32 0.0, %v1595
        %v1597 = vpop.f32.mrf.mxu0
        %1598 = vmatprep.mubr.f32.mxu0 0.0
        %1599 = vmatmul.mubr.f32.gmra.mxu0 %v1527
        %v1600 = vpop.f32.mrf.mxu0
        %v1601 = vadd.f32 0.0, %v1600
        %v1602 = vpop.f32.mrf.mxu0
        %1603 = vdwg.mxu0
        %v1605 = vsel %vm1272, %v1359, 0
        %v1608 = vsel %vm1272, %v1360, 0
        %1610 = vmatprep.subr.mxu0 0.0
        %1611 = vmatpush1.msra.mxu0 0.0
        %1612 = vmatprep.subr.mxu0 0.0
        %1613 = vmatpush1.msra.mxu0 0.0
        %1614 = vmatprep.subr.mxu0 0.0
        %1615 = vmatpush1.msra.mxu0 0.0
        %1616 = vmatprep.subr.mxu0 0.0
        %1617 = vmatpush1.msra.mxu0 0.0
        %1618 = vmatprep.subr.mxu0 0.0
        %1619 = vmatpush1.msra.mxu0 0.0
        %1620 = vmatprep.subr.mxu0 0.0
        %1621 = vmatpush1.msra.mxu0 0.0
        %1622 = vmatprep.subr.mxu0 0.0
        %1623 = vmatpush1.msra.mxu0 0.0
        %1624 = vmatprep.subr.mxu0 0.0
        %1625 = vmatpush1.msra.mxu0 0.0
        %1626 = vmatprep.subr.mxu0 0.0
        %1627 = vmatpush1.msra.mxu0 0.0
        %1628 = vmatprep.subr.mxu0 0.0
        %1629 = vmatpush1.msra.mxu0 0.0
        %1630 = vmatprep.subr.mxu0 0.0
        %1631 = vmatpush1.msra.mxu0 0.0
        %1632 = vmatprep.subr.mxu0 0.0
        %1633 = vmatpush1.msra.mxu0 0.0
        %1634 = vmatprep.subr.mxu0 0.0
        %1635 = vmatpush1.msra.mxu0 0.0
        %1636 = vmatprep.subr.mxu0 0.0
        %1637 = vmatpush1.msra.mxu0 0.0
        %1638 = vmatprep.subr.mxu0 0.0
        %1639 = vmatpush1.msra.mxu0 %v934
        %1640 = vmatprep.subr.mxu0 0.0
        %1641 = vmatpush1.msra.mxu0 %v932
        %1642 = vmatprep.subr.mxu0 0.0
        %1643 = vmatpush2.msra.mxu0 0.0
        %1644 = vmatprep.subr.mxu0 0.0
        %1645 = vmatpush2.msra.mxu0 0.0
        %1646 = vmatprep.subr.mxu0 0.0
        %1647 = vmatpush2.msra.mxu0 0.0
        %1648 = vmatprep.subr.mxu0 0.0
        %1649 = vmatpush2.msra.mxu0 0.0
        %1650 = vmatprep.subr.mxu0 0.0
        %1651 = vmatpush2.msra.mxu0 0.0
        %1652 = vmatprep.subr.mxu0 0.0
        %1653 = vmatpush2.msra.mxu0 0.0
        %1654 = vmatprep.subr.mxu0 0.0
        %1655 = vmatpush2.msra.mxu0 0.0
        %1656 = vmatprep.subr.mxu0 0.0
        %1657 = vmatpush2.msra.mxu0 0.0
        %1658 = vmatprep.subr.mxu0 0.0
        %1659 = vmatpush2.msra.mxu0 0.0
        %1660 = vmatprep.subr.mxu0 0.0
        %1661 = vmatpush2.msra.mxu0 0.0
        %1662 = vmatprep.subr.mxu0 0.0
        %1663 = vmatpush2.msra.mxu0 0.0
        %1664 = vmatprep.subr.mxu0 0.0
        %1665 = vmatpush2.msra.mxu0 0.0
        %1666 = vmatprep.subr.mxu0 0.0
        %1667 = vmatpush2.msra.mxu0 0.0
        %1668 = vmatprep.subr.mxu0 0.0
        %1669 = vmatpush2.msra.mxu0 0.0
        %1670 = vmatprep.subr.mxu0 0.0
        %1671 = vmatpush2.msra.mxu0 0.0
        %1672 = vmatprep.subr.mxu0 0.0
        %1673 = vmatpush2.msra.mxu0 0.0
        %1674 = vmatprep.mubr.f32.mxu0 0.0
        %1675 = vmatmul.mubr.f32.gmra.mxu0 %v1605
        %v1676 = vpop.f32.mrf.mxu0
        %v1677 = vadd.f32 0.0, %v1676
        %v1678 = vpop.f32.mrf.mxu0
        %1679 = vmatprep.mubr.f32.mxu0 0.0
        %1680 = vmatmul.mubr.f32.gmra.mxu0 %v1608
        %v1681 = vpop.f32.mrf.mxu0
        %v1682 = vadd.f32 0.0, %v1681
        %v1683 = vpop.f32.mrf.mxu0
        %1684 = vdwg.mxu0
        %v1685 = vld [vmem:[%s544] sm:$0xff]
        %v1686 = vld [vmem:[%s544 + $0x8] sm:$0xff]
        %v1687 = vld [vmem:[%s544 + $0x10] sm:$0xff]
        %v1688 = vld [vmem:[%s544 + $0x18] sm:$0xff]
        %v1689 = vld [vmem:[%s544 + $0x20] sm:$0xff]
        %v1690 = vld [vmem:[%s544 + $0x28] sm:$0xff]
        %v1691 = vld [vmem:[%s544 + $0x30] sm:$0xff]
        %v1692 = vld [vmem:[%s544 + $0x38] sm:$0xff]
        %v1693 = vld [vmem:[%s544 + $0x40] sm:$0xff]
        %v1694 = vld [vmem:[%s544 + $0x48] sm:$0xff]
        %v1695 = vld [vmem:[%s544 + $0x50] sm:$0xff]
        %v1696 = vld [vmem:[%s544 + $0x58] sm:$0xff]
        %v1697 = vld [vmem:[%s544 + $0x60] sm:$0xff]
        %v1698 = vld [vmem:[%s544 + $0x68] sm:$0xff]
        %v1699 = vld [vmem:[%s544 + $0x70] sm:$0xff]
        %v1700 = vld [vmem:[%s544 + $0x78] sm:$0xff]
        %v1702 = vsel %vm939, %v1596, 0
        %v1705 = vsel %vm939, %v1601, 0
        %v1708 = vsel %vm939, %v1677, 0
        %v1711 = vsel %vm939, %v1682, 0
        %1713 = vmatprep.subr.mxu0 0.0
        %1714 = vmatpush1.msra.mxu0 0.0
        %1715 = vmatprep.subr.mxu0 0.0
        %1716 = vmatpush1.msra.mxu0 0.0
        %1717 = vmatprep.subr.mxu0 0.0
        %1718 = vmatpush1.msra.mxu0 0.0
        %1719 = vmatprep.subr.mxu0 0.0
        %1720 = vmatpush1.msra.mxu0 0.0
        %1721 = vmatprep.subr.mxu0 0.0
        %1722 = vmatpush1.msra.mxu0 0.0
        %1723 = vmatprep.subr.mxu0 0.0
        %1724 = vmatpush1.msra.mxu0 0.0
        %1725 = vmatprep.subr.mxu0 0.0
        %1726 = vmatpush1.msra.mxu0 0.0
        %1727 = vmatprep.subr.mxu0 0.0
        %1728 = vmatpush1.msra.mxu0 0.0
        %1729 = vmatprep.subr.mxu0 0.0
        %1730 = vmatpush1.msra.mxu0 %v1700
        %1731 = vmatprep.subr.mxu0 0.0
        %1732 = vmatpush1.msra.mxu0 %v1699
        %1733 = vmatprep.subr.mxu0 0.0
        %1734 = vmatpush1.msra.mxu0 %v1698
        %1735 = vmatprep.subr.mxu0 0.0
        %1736 = vmatpush1.msra.mxu0 %v1697
        %1737 = vmatprep.subr.mxu0 0.0
        %1738 = vmatpush1.msra.mxu0 %v1696
        %1739 = vmatprep.subr.mxu0 0.0
        %1740 = vmatpush1.msra.mxu0 %v1695
        %1741 = vmatprep.subr.mxu0 0.0
        %1742 = vmatpush1.msra.mxu0 %v1694
        %1743 = vmatprep.subr.mxu0 0.0
        %1744 = vmatpush1.msra.mxu0 %v1693
        %1745 = vmatprep.subr.mxu0 0.0
        %1746 = vmatpush2.msra.mxu0 0.0
        %1747 = vmatprep.subr.mxu0 0.0
        %1748 = vmatpush2.msra.mxu0 0.0
        %1749 = vmatprep.subr.mxu0 0.0
        %1750 = vmatpush2.msra.mxu0 0.0
        %1751 = vmatprep.subr.mxu0 0.0
        %1752 = vmatpush2.msra.mxu0 0.0
        %1753 = vmatprep.subr.mxu0 0.0
        %1754 = vmatpush2.msra.mxu0 0.0
        %1755 = vmatprep.subr.mxu0 0.0
        %1756 = vmatpush2.msra.mxu0 0.0
        %1757 = vmatprep.subr.mxu0 0.0
        %1758 = vmatpush2.msra.mxu0 0.0
        %1759 = vmatprep.subr.mxu0 0.0
        %1760 = vmatpush2.msra.mxu0 0.0
        %1761 = vmatprep.subr.mxu0 0.0
        %1762 = vmatpush2.msra.mxu0 0.0
        %1763 = vmatprep.subr.mxu0 0.0
        %1764 = vmatpush2.msra.mxu0 0.0
        %1765 = vmatprep.subr.mxu0 0.0
        %1766 = vmatpush2.msra.mxu0 0.0
        %1767 = vmatprep.subr.mxu0 0.0
        %1768 = vmatpush2.msra.mxu0 0.0
        %1769 = vmatprep.subr.mxu0 0.0
        %1770 = vmatpush2.msra.mxu0 0.0
        %1771 = vmatprep.subr.mxu0 0.0
        %1772 = vmatpush2.msra.mxu0 0.0
        %1773 = vmatprep.subr.mxu0 0.0
        %1774 = vmatpush2.msra.mxu0 0.0
        %1775 = vmatprep.subr.mxu0 0.0
        %1776 = vmatpush2.msra.mxu0 0.0
        %1777 = vmatprep.mubr.f32.mxu0 0.0
        %1778 = vmatmul.mubr.f32.gmra.mxu0 %v1702
        %v1779 = vpop.f32.mrf.mxu0
        %v1780 = vadd.f32 0.0, %v1779
        %v1781 = vpop.f32.mrf.mxu0
        %1782 = vmatprep.mubr.f32.mxu0 0.0
        %1783 = vmatmul.mubr.f32.gmra.mxu0 %v1705
        %v1784 = vpop.f32.mrf.mxu0
        %v1785 = vadd.f32 0.0, %v1784
        %v1786 = vpop.f32.mrf.mxu0
        %1787 = vmatprep.mubr.f32.mxu0 0.0
        %1788 = vmatmul.mubr.f32.gmra.mxu0 %v1708
        %v1789 = vpop.f32.mrf.mxu0
        %v1790 = vadd.f32 0.0, %v1789
        %v1791 = vpop.f32.mrf.mxu0
        %1792 = vmatprep.mubr.f32.mxu0 0.0
        %1793 = vmatmul.mubr.f32.gmra.mxu0 %v1711
        %v1794 = vpop.f32.mrf.mxu0
        %v1795 = vadd.f32 0.0, %v1794
        %v1796 = vpop.f32.mrf.mxu0
        %1797 = vdwg.mxu0
        %v1799 = vsel %vm939, %v1434, 0
        %v1802 = vsel %vm939, %v1439, 0
        %v1805 = vsel %vm939, %v1515, 0
        %v1808 = vsel %vm939, %v1520, 0
        %1810 = vmatprep.subr.mxu0 0.0
        %1811 = vmatpush1.msra.mxu0 0.0
        %1812 = vmatprep.subr.mxu0 0.0
        %1813 = vmatpush1.msra.mxu0 0.0
        %1814 = vmatprep.subr.mxu0 0.0
        %1815 = vmatpush1.msra.mxu0 0.0
        %1816 = vmatprep.subr.mxu0 0.0
        %1817 = vmatpush1.msra.mxu0 0.0
        %1818 = vmatprep.subr.mxu0 0.0
        %1819 = vmatpush1.msra.mxu0 0.0
        %1820 = vmatprep.subr.mxu0 0.0
        %1821 = vmatpush1.msra.mxu0 0.0
        %1822 = vmatprep.subr.mxu0 0.0
        %1823 = vmatpush1.msra.mxu0 0.0
        %1824 = vmatprep.subr.mxu0 0.0
        %1825 = vmatpush1.msra.mxu0 0.0
        %1826 = vmatprep.subr.mxu0 0.0
        %1827 = vmatpush1.msra.mxu0 %v1692
        %1828 = vmatprep.subr.mxu0 0.0
        %1829 = vmatpush1.msra.mxu0 %v1691
        %1830 = vmatprep.subr.mxu0 0.0
        %1831 = vmatpush1.msra.mxu0 %v1690
        %1832 = vmatprep.subr.mxu0 0.0
        %1833 = vmatpush1.msra.mxu0 %v1689
        %1834 = vmatprep.subr.mxu0 0.0
        %1835 = vmatpush1.msra.mxu0 %v1688
        %1836 = vmatprep.subr.mxu0 0.0
        %1837 = vmatpush1.msra.mxu0 %v1687
        %1838 = vmatprep.subr.mxu0 0.0
        %1839 = vmatpush1.msra.mxu0 %v1686
        %1840 = vmatprep.subr.mxu0 0.0
        %1841 = vmatpush1.msra.mxu0 %v1685
        %1842 = vmatprep.subr.mxu0 0.0
        %1843 = vmatpush2.msra.mxu0 0.0
        %1844 = vmatprep.subr.mxu0 0.0
        %1845 = vmatpush2.msra.mxu0 0.0
        %1846 = vmatprep.subr.mxu0 0.0
        %1847 = vmatpush2.msra.mxu0 0.0
        %1848 = vmatprep.subr.mxu0 0.0
        %1849 = vmatpush2.msra.mxu0 0.0
        %1850 = vmatprep.subr.mxu0 0.0
        %1851 = vmatpush2.msra.mxu0 0.0
        %1852 = vmatprep.subr.mxu0 0.0
        %1853 = vmatpush2.msra.mxu0 0.0
        %1854 = vmatprep.subr.mxu0 0.0
        %1855 = vmatpush2.msra.mxu0 0.0
        %1856 = vmatprep.subr.mxu0 0.0
        %1857 = vmatpush2.msra.mxu0 0.0
        %1858 = vmatprep.subr.mxu0 0.0
        %1859 = vmatpush2.msra.mxu0 0.0
        %1860 = vmatprep.subr.mxu0 0.0
        %1861 = vmatpush2.msra.mxu0 0.0
        %1862 = vmatprep.subr.mxu0 0.0
        %1863 = vmatpush2.msra.mxu0 0.0
        %1864 = vmatprep.subr.mxu0 0.0
        %1865 = vmatpush2.msra.mxu0 0.0
        %1866 = vmatprep.subr.mxu0 0.0
        %1867 = vmatpush2.msra.mxu0 0.0
        %1868 = vmatprep.subr.mxu0 0.0
        %1869 = vmatpush2.msra.mxu0 0.0
        %1870 = vmatprep.subr.mxu0 0.0
        %1871 = vmatpush2.msra.mxu0 0.0
        %1872 = vmatprep.subr.mxu0 0.0
        %1873 = vmatpush2.msra.mxu0 0.0
        %1874 = vmatprep.mubr.f32.mxu0 0.0
        %1875 = vmatmul.mubr.f32.gmra.mxu0 %v1799
        %v1876 = vpop.f32.mrf.mxu0
        %v1877 = vadd.f32 %v1780, %v1876
        %v1878 = vpop.f32.mrf.mxu0
        %1879 = vmatprep.mubr.f32.mxu0 0.0
        %1880 = vmatmul.mubr.f32.gmra.mxu0 %v1802
        %v1881 = vpop.f32.mrf.mxu0
        %v1882 = vadd.f32 %v1785, %v1881
        %v1883 = vpop.f32.mrf.mxu0
        %1884 = vmatprep.mubr.f32.mxu0 0.0
        %1885 = vmatmul.mubr.f32.gmra.mxu0 %v1805
        %v1886 = vpop.f32.mrf.mxu0
        %v1887 = vadd.f32 %v1790, %v1886
        %v1888 = vpop.f32.mrf.mxu0
        %1889 = vmatprep.mubr.f32.mxu0 0.0
        %1890 = vmatmul.mubr.f32.gmra.mxu0 %v1808
        %v1891 = vpop.f32.mrf.mxu0
        %v1892 = vadd.f32 %v1795, %v1891
        %v1893 = vpop.f32.mrf.mxu0
        %1894 = vdwg.mxu0
        %v1895 = vadd.f32 %v669, %v1877
        %v1896 = vadd.f32 %v670, %v1882
        %v1897 = vadd.f32 %v671, %v1887
        %v1898 = vadd.f32 %v672, %v1892
        %v1899 = vld [vmem:[%s642] sm:$0x1]
        %v1900 = vld [vmem:[%s552] sm:$0x1]
        %1901 = vadd.xlane.f32.xlu0 %v1895
        %v1902 = vpop.xlane.xlu0 %1901
        %1903 = vadd.xlane.f32.xlu0 %v1896
        %v1904 = vpop.xlane.xlu0 %1903
        %1905 = vadd.xlane.f32.xlu0 %v1897
        %v1906 = vpop.xlane.xlu0 %1905
        %1907 = vadd.xlane.f32.xlu0 %v1898
        %v1908 = vpop.xlane.xlu0 %1907
        %v1909 = vrcp.pop 128.0
        %v1910 = vmul.f32 %v1902, %v1909
        %v1911 = vmul.f32 %v1904, %v1909
        %v1912 = vmul.f32 %v1906, %v1909
        %v1913 = vmul.f32 %v1908, %v1909
        %v1914 = vmul.f32 %v1895, %v1895
        %v1915 = vmul.f32 %v1896, %v1896
        %v1916 = vmul.f32 %v1897, %v1897
        %v1917 = vmul.f32 %v1898, %v1898
        %1918 = vadd.xlane.f32.xlu0 %v1914
        %v1919 = vpop.xlane.xlu0 %1918
        %1920 = vadd.xlane.f32.xlu0 %v1915
        %v1921 = vpop.xlane.xlu0 %1920
        %1922 = vadd.xlane.f32.xlu0 %v1916
        %v1923 = vpop.xlane.xlu0 %1922
        %1924 = vadd.xlane.f32.xlu0 %v1917
        %v1925 = vpop.xlane.xlu0 %1924
        %v1926 = vmul.f32 %v1919, %v1909
        %v1927 = vmul.f32 %v1921, %v1909
        %v1928 = vmul.f32 %v1923, %v1909
        %v1929 = vmul.f32 %v1925, %v1909
        %v1930 = vmul.f32 %v1910, %v1910
        %v1931 = vmul.f32 %v1911, %v1911
        %v1932 = vmul.f32 %v1912, %v1912
        %v1933 = vmul.f32 %v1913, %v1913
        %v1934 = vsub.f32 %v1926, %v1930
        %v1935 = vsub.f32 %v1927, %v1931
        %v1936 = vsub.f32 %v1928, %v1932
        %v1937 = vsub.f32 %v1929, %v1933
        %v1938 = vsub.f32 %v1895, %v1910
        %v1939 = vsub.f32 %v1896, %v1911
        %v1940 = vsub.f32 %v1897, %v1912
        %v1941 = vsub.f32 %v1898, %v1913
        %v1942 = vadd.f32 %v1934, 1e-05
        %v1943 = vadd.f32 %v1935, 1e-05
        %v1944 = vadd.f32 %v1936, 1e-05
        %v1945 = vadd.f32 %v1937, 1e-05
        %v1946 = vrsqrt.pop %v1942
        %v1947 = vrsqrt.pop %v1943
        %v1948 = vrsqrt.pop %v1944
        %v1949 = vrsqrt.pop %v1945
        %v1950 = vmul.f32 %v1938, %v1946
        %v1951 = vmul.f32 %v1939, %v1947
        %v1952 = vmul.f32 %v1940, %v1948
        %v1953 = vmul.f32 %v1941, %v1949
        %v1955 = vlaneseq
        %v1956 = vshrl.u32 %v1955, 7
        %v1957 = vsub.s32 0, %v1956
        %v1958 = vrot.slane %v1899, %v1957
        %v1960 = vmul.f32 %v1950, %v1958
        %v1961 = vmul.f32 %v1951, %v1958
        %v1962 = vmul.f32 %v1952, %v1958
        %v1963 = vmul.f32 %v1953, %v1958
        %v1965 = vlaneseq
        %v1966 = vshrl.u32 %v1965, 7
        %v1967 = vsub.s32 0, %v1966
        %v1968 = vrot.slane %v1900, %v1967
        %v1970 = vadd.f32 %v1960, %v1968
        %v1971 = vadd.f32 %v1961, %v1968
        %v1972 = vadd.f32 %v1962, %v1968
        %v1973 = vadd.f32 %v1963, %v1968
        %v1974 = vld [vmem:[%s561] sm:$0xff]
        %v1975 = vld [vmem:[%s561 + $0x8] sm:$0xff]
        %v1976 = vld [vmem:[%s561 + $0x10] sm:$0xff]
        %v1977 = vld [vmem:[%s561 + $0x18] sm:$0xff]
        %v1978 = vld [vmem:[%s561 + $0x20] sm:$0xff]
        %v1979 = vld [vmem:[%s561 + $0x28] sm:$0xff]
        %v1980 = vld [vmem:[%s561 + $0x30] sm:$0xff]
        %v1981 = vld [vmem:[%s561 + $0x38] sm:$0xff]
        %v1982 = vld [vmem:[%s561 + $0x40] sm:$0xff]
        %v1983 = vld [vmem:[%s561 + $0x48] sm:$0xff]
        %v1984 = vld [vmem:[%s561 + $0x50] sm:$0xff]
        %v1985 = vld [vmem:[%s561 + $0x58] sm:$0xff]
        %v1986 = vld [vmem:[%s561 + $0x60] sm:$0xff]
        %v1987 = vld [vmem:[%s561 + $0x68] sm:$0xff]
        %v1988 = vld [vmem:[%s561 + $0x70] sm:$0xff]
        %v1989 = vld [vmem:[%s561 + $0x78] sm:$0xff]
        %v1990 = vld [vmem:[%s561 + $0x80] sm:$0xff]
        %v1991 = vld [vmem:[%s561 + $0x88] sm:$0xff]
        %v1992 = vld [vmem:[%s561 + $0x90] sm:$0xff]
        %v1993 = vld [vmem:[%s561 + $0x98] sm:$0xff]
        %v1994 = vld [vmem:[%s561 + $0xa0] sm:$0xff]
        %v1995 = vld [vmem:[%s561 + $0xa8] sm:$0xff]
        %v1996 = vld [vmem:[%s561 + $0xb0] sm:$0xff]
        %v1997 = vld [vmem:[%s561 + $0xb8] sm:$0xff]
        %v1998 = vld [vmem:[%s561 + $0xc0] sm:$0xff]
        %v1999 = vld [vmem:[%s561 + $0xc8] sm:$0xff]
        %v2000 = vld [vmem:[%s561 + $0xd0] sm:$0xff]
        %v2001 = vld [vmem:[%s561 + $0xd8] sm:$0xff]
        %v2002 = vld [vmem:[%s561 + $0xe0] sm:$0xff]
        %v2003 = vld [vmem:[%s561 + $0xe8] sm:$0xff]
        %v2004 = vld [vmem:[%s561 + $0xf0] sm:$0xff]
        %v2005 = vld [vmem:[%s561 + $0xf8] sm:$0xff]
        %v2006 = vld [vmem:[%s646] sm:$0x3]
        %v2008 = vlaneseq
        %v2009 = vshrl.u32 %v2008, 7
        %v2010 = vsub.s32 0, %v2009
        %v2011 = vrot.slane %v2006, %v2010
        %v2012 = vlaneseq
        %v2013 = vshrl.u32 %v2012, 7
        %v2014 = vsub.s32 1, %v2013
        %v2015 = vrot.slane %v2006, %v2014
        %2018 = vmatprep.subr.mxu0 %v2005
        %2019 = vmatpush1.msra.mxu0 %v2004
        %2020 = vmatprep.subr.mxu0 %v2003
        %2021 = vmatpush1.msra.mxu0 %v2002
        %2022 = vmatprep.subr.mxu0 %v2001
        %2023 = vmatpush1.msra.mxu0 %v2000
        %2024 = vmatprep.subr.mxu0 %v1999
        %2025 = vmatpush1.msra.mxu0 %v1998
        %2026 = vmatprep.subr.mxu0 %v1997
        %2027 = vmatpush1.msra.mxu0 %v1996
        %2028 = vmatprep.subr.mxu0 %v1995
        %2029 = vmatpush1.msra.mxu0 %v1994
        %2030 = vmatprep.subr.mxu0 %v1993
        %2031 = vmatpush1.msra.mxu0 %v1992
        %2032 = vmatprep.subr.mxu0 %v1991
        %2033 = vmatpush1.msra.mxu0 %v1990
        %2034 = vmatprep.subr.mxu0 %v1989
        %2035 = vmatpush1.msra.mxu0 %v1988
        %2036 = vmatprep.subr.mxu0 %v1987
        %2037 = vmatpush1.msra.mxu0 %v1986
        %2038 = vmatprep.subr.mxu0 %v1985
        %2039 = vmatpush1.msra.mxu0 %v1984
        %2040 = vmatprep.subr.mxu0 %v1983
        %2041 = vmatpush1.msra.mxu0 %v1982
        %2042 = vmatprep.subr.mxu0 %v1981
        %2043 = vmatpush1.msra.mxu0 %v1980
        %2044 = vmatprep.subr.mxu0 %v1979
        %2045 = vmatpush1.msra.mxu0 %v1978
        %2046 = vmatprep.subr.mxu0 %v1977
        %2047 = vmatpush1.msra.mxu0 %v1976
        %2048 = vmatprep.subr.mxu0 %v1975
        %2049 = vmatpush1.msra.mxu0 %v1974
        %2050 = vmatprep.subr.mxu0 0.0
        %2051 = vmatpush2.msra.mxu0 0.0
        %2052 = vmatprep.subr.mxu0 0.0
        %2053 = vmatpush2.msra.mxu0 0.0
        %2054 = vmatprep.subr.mxu0 0.0
        %2055 = vmatpush2.msra.mxu0 0.0
        %2056 = vmatprep.subr.mxu0 0.0
        %2057 = vmatpush2.msra.mxu0 0.0
        %2058 = vmatprep.subr.mxu0 0.0
        %2059 = vmatpush2.msra.mxu0 0.0
        %2060 = vmatprep.subr.mxu0 0.0
        %2061 = vmatpush2.msra.mxu0 0.0
        %2062 = vmatprep.subr.mxu0 0.0
        %2063 = vmatpush2.msra.mxu0 0.0
        %2064 = vmatprep.subr.mxu0 0.0
        %2065 = vmatpush2.msra.mxu0 0.0
        %2066 = vmatprep.subr.mxu0 0.0
        %2067 = vmatpush2.msra.mxu0 0.0
        %2068 = vmatprep.subr.mxu0 0.0
        %2069 = vmatpush2.msra.mxu0 0.0
        %2070 = vmatprep.subr.mxu0 0.0
        %2071 = vmatpush2.msra.mxu0 0.0
        %2072 = vmatprep.subr.mxu0 0.0
        %2073 = vmatpush2.msra.mxu0 0.0
        %2074 = vmatprep.subr.mxu0 0.0
        %2075 = vmatpush2.msra.mxu0 0.0
        %2076 = vmatprep.subr.mxu0 0.0
        %2077 = vmatpush2.msra.mxu0 0.0
        %2078 = vmatprep.subr.mxu0 0.0
        %2079 = vmatpush2.msra.mxu0 0.0
        %2080 = vmatprep.subr.mxu0 0.0
        %2081 = vmatpush2.msra.mxu0 0.0
        %2082 = vmatprep.mubr.f32.mxu0 0.0
        %2083 = vmatmul.mubr.f32.gmra.mxu0 %v1970
        %v2084 = vpop.f32.mrf.mxu0
        %v2085 = vadd.f32 %v2011, %v2084
        %v2086 = vpop.f32.mrf.mxu0
        %v2087 = vadd.f32 %v2015, %v2086
        %2088 = vmatprep.mubr.f32.mxu0 0.0
        %2089 = vmatmul.mubr.f32.gmra.mxu0 %v1971
        %v2090 = vpop.f32.mrf.mxu0
        %v2091 = vadd.f32 %v2011, %v2090
        %v2092 = vpop.f32.mrf.mxu0
        %v2093 = vadd.f32 %v2015, %v2092
        %2094 = vmatprep.mubr.f32.mxu0 0.0
        %2095 = vmatmul.mubr.f32.gmra.mxu0 %v1972
        %v2096 = vpop.f32.mrf.mxu0
        %v2097 = vadd.f32 %v2011, %v2096
        %v2098 = vpop.f32.mrf.mxu0
        %v2099 = vadd.f32 %v2015, %v2098
        %2100 = vmatprep.mubr.f32.mxu0 0.0
        %2101 = vmatmul.mubr.f32.gmra.mxu0 %v1973
        %v2102 = vpop.f32.mrf.mxu0
        %v2103 = vadd.f32 %v2011, %v2102
        %v2104 = vpop.f32.mrf.mxu0
        %v2105 = vadd.f32 %v2015, %v2104
        %2106 = vdwg.mxu0
        %v2107 = vmul.f32 %v2085, 0.5
        %v2108 = vmul.f32 %v2087, 0.5
        %v2109 = vmul.f32 %v2091, 0.5
        %v2110 = vmul.f32 %v2093, 0.5
        %v2111 = vmul.f32 %v2097, 0.5
        %v2112 = vmul.f32 %v2099, 0.5
        %v2113 = vmul.f32 %v2103, 0.5
        %v2114 = vmul.f32 %v2105, 0.5
        %v2115 = vmul.f32 %v2085, 0.70710677
        %v2116 = vmul.f32 %v2087, 0.70710677
        %v2117 = vmul.f32 %v2091, 0.70710677
        %v2118 = vmul.f32 %v2093, 0.70710677
        %v2119 = vmul.f32 %v2097, 0.70710677
        %v2120 = vmul.f32 %v2099, 0.70710677
        %v2121 = vmul.f32 %v2103, 0.70710677
        %v2122 = vmul.f32 %v2105, 0.70710677
        %v2123 = verf.f32.pop %v2115
        %v2124 = verf.f32.pop %v2116
        %v2125 = verf.f32.pop %v2117
        %v2126 = verf.f32.pop %v2118
        %v2127 = verf.f32.pop %v2119
        %v2128 = verf.f32.pop %v2120
        %v2129 = verf.f32.pop %v2121
        %v2130 = verf.f32.pop %v2122
        %v2131 = vadd.f32 %v2123, 1.0
        %v2132 = vadd.f32 %v2124, 1.0
        %v2133 = vadd.f32 %v2125, 1.0
        %v2134 = vadd.f32 %v2126, 1.0
        %v2135 = vadd.f32 %v2127, 1.0
        %v2136 = vadd.f32 %v2128, 1.0
        %v2137 = vadd.f32 %v2129, 1.0
        %v2138 = vadd.f32 %v2130, 1.0
        %v2139 = vmul.f32 %v2107, %v2131
        %v2140 = vmul.f32 %v2108, %v2132
        %v2141 = vmul.f32 %v2109, %v2133
        %v2142 = vmul.f32 %v2110, %v2134
        %v2143 = vmul.f32 %v2111, %v2135
        %v2144 = vmul.f32 %v2112, %v2136
        %v2145 = vmul.f32 %v2113, %v2137
        %v2146 = vmul.f32 %v2114, %v2138
        %v2147 = vld [vmem:[%s570] sm:$0xff]
        %v2148 = vld [vmem:[%s570 + $0x8] sm:$0xff]
        %v2149 = vld [vmem:[%s570 + $0x10] sm:$0xff]
        %v2150 = vld [vmem:[%s570 + $0x18] sm:$0xff]
        %v2151 = vld [vmem:[%s570 + $0x20] sm:$0xff]
        %v2152 = vld [vmem:[%s570 + $0x28] sm:$0xff]
        %v2153 = vld [vmem:[%s570 + $0x30] sm:$0xff]
        %v2154 = vld [vmem:[%s570 + $0x38] sm:$0xff]
        %v2155 = vld [vmem:[%s570 + $0x40] sm:$0xff]
        %v2156 = vld [vmem:[%s570 + $0x48] sm:$0xff]
        %v2157 = vld [vmem:[%s570 + $0x50] sm:$0xff]
        %v2158 = vld [vmem:[%s570 + $0x58] sm:$0xff]
        %v2159 = vld [vmem:[%s570 + $0x60] sm:$0xff]
        %v2160 = vld [vmem:[%s570 + $0x68] sm:$0xff]
        %v2161 = vld [vmem:[%s570 + $0x70] sm:$0xff]
        %v2162 = vld [vmem:[%s570 + $0x78] sm:$0xff]
        %v2163 = vld [vmem:[%s570 + $0x80] sm:$0xff]
        %v2164 = vld [vmem:[%s570 + $0x88] sm:$0xff]
        %v2165 = vld [vmem:[%s570 + $0x90] sm:$0xff]
        %v2166 = vld [vmem:[%s570 + $0x98] sm:$0xff]
        %v2167 = vld [vmem:[%s570 + $0xa0] sm:$0xff]
        %v2168 = vld [vmem:[%s570 + $0xa8] sm:$0xff]
        %v2169 = vld [vmem:[%s570 + $0xb0] sm:$0xff]
        %v2170 = vld [vmem:[%s570 + $0xb8] sm:$0xff]
        %v2171 = vld [vmem:[%s570 + $0xc0] sm:$0xff]
        %v2172 = vld [vmem:[%s570 + $0xc8] sm:$0xff]
        %v2173 = vld [vmem:[%s570 + $0xd0] sm:$0xff]
        %v2174 = vld [vmem:[%s570 + $0xd8] sm:$0xff]
        %v2175 = vld [vmem:[%s570 + $0xe0] sm:$0xff]
        %v2176 = vld [vmem:[%s570 + $0xe8] sm:$0xff]
        %v2177 = vld [vmem:[%s570 + $0xf0] sm:$0xff]
        %v2178 = vld [vmem:[%s570 + $0xf8] sm:$0xff]
        %v2179 = vld [vmem:[%s649] sm:$0x1]
        %v2181 = vlaneseq
        %v2182 = vshrl.u32 %v2181, 7
        %v2183 = vsub.s32 0, %v2182
        %v2184 = vrot.slane %v2179, %v2183
        %2186 = vmatprep.subr.mxu0 0.0
        %2187 = vmatpush1.msra.mxu0 %v2162
        %2188 = vmatprep.subr.mxu0 0.0
        %2189 = vmatpush1.msra.mxu0 %v2161
        %2190 = vmatprep.subr.mxu0 0.0
        %2191 = vmatpush1.msra.mxu0 %v2160
        %2192 = vmatprep.subr.mxu0 0.0
        %2193 = vmatpush1.msra.mxu0 %v2159
        %2194 = vmatprep.subr.mxu0 0.0
        %2195 = vmatpush1.msra.mxu0 %v2158
        %2196 = vmatprep.subr.mxu0 0.0
        %2197 = vmatpush1.msra.mxu0 %v2157
        %2198 = vmatprep.subr.mxu0 0.0
        %2199 = vmatpush1.msra.mxu0 %v2156
        %2200 = vmatprep.subr.mxu0 0.0
        %2201 = vmatpush1.msra.mxu0 %v2155
        %2202 = vmatprep.subr.mxu0 0.0
        %2203 = vmatpush1.msra.mxu0 %v2154
        %2204 = vmatprep.subr.mxu0 0.0
        %2205 = vmatpush1.msra.mxu0 %v2153
        %2206 = vmatprep.subr.mxu0 0.0
        %2207 = vmatpush1.msra.mxu0 %v2152
        %2208 = vmatprep.subr.mxu0 0.0
        %2209 = vmatpush1.msra.mxu0 %v2151
        %2210 = vmatprep.subr.mxu0 0.0
        %2211 = vmatpush1.msra.mxu0 %v2150
        %2212 = vmatprep.subr.mxu0 0.0
        %2213 = vmatpush1.msra.mxu0 %v2149
        %2214 = vmatprep.subr.mxu0 0.0
        %2215 = vmatpush1.msra.mxu0 %v2148
        %2216 = vmatprep.subr.mxu0 0.0
        %2217 = vmatpush1.msra.mxu0 %v2147
        %2218 = vmatprep.subr.mxu0 0.0
        %2219 = vmatpush2.msra.mxu0 %v2178
        %2220 = vmatprep.subr.mxu0 0.0
        %2221 = vmatpush2.msra.mxu0 %v2177
        %2222 = vmatprep.subr.mxu0 0.0
        %2223 = vmatpush2.msra.mxu0 %v2176
        %2224 = vmatprep.subr.mxu0 0.0
        %2225 = vmatpush2.msra.mxu0 %v2175
        %2226 = vmatprep.subr.mxu0 0.0
        %2227 = vmatpush2.msra.mxu0 %v2174
        %2228 = vmatprep.subr.mxu0 0.0
        %2229 = vmatpush2.msra.mxu0 %v2173
        %2230 = vmatprep.subr.mxu0 0.0
        %2231 = vmatpush2.msra.mxu0 %v2172
        %2232 = vmatprep.subr.mxu0 0.0
        %2233 = vmatpush2.msra.mxu0 %v2171
        %2234 = vmatprep.subr.mxu0 0.0
        %2235 = vmatpush2.msra.mxu0 %v2170
        %2236 = vmatprep.subr.mxu0 0.0
        %2237 = vmatpush2.msra.mxu0 %v2169
        %2238 = vmatprep.subr.mxu0 0.0
        %2239 = vmatpush2.msra.mxu0 %v2168
        %2240 = vmatprep.subr.mxu0 0.0
        %2241 = vmatpush2.msra.mxu0 %v2167
        %2242 = vmatprep.subr.mxu0 0.0
        %2243 = vmatpush2.msra.mxu0 %v2166
        %2244 = vmatprep.subr.mxu0 0.0
        %2245 = vmatpush2.msra.mxu0 %v2165
        %2246 = vmatprep.subr.mxu0 0.0
        %2247 = vmatpush2.msra.mxu0 %v2164
        %2248 = vmatprep.subr.mxu0 0.0
        %2249 = vmatpush2.msra.mxu0 %v2163
        %2250 = vmatprep.mubr.f32.mxu0 %v2140
        %2251 = vmatmul.mubr.f32.gmra.mxu0 %v2139
        %v2252 = vpop.f32.mrf.mxu0
        %v2253 = vadd.f32 %v2184, %v2252
        %v2254 = vpop.f32.mrf.mxu0
        %2255 = vmatprep.mubr.f32.mxu0 %v2142
        %2256 = vmatmul.mubr.f32.gmra.mxu0 %v2141
        %v2257 = vpop.f32.mrf.mxu0
        %v2258 = vadd.f32 %v2184, %v2257
        %v2259 = vpop.f32.mrf.mxu0
        %2260 = vmatprep.mubr.f32.mxu0 %v2144
        %2261 = vmatmul.mubr.f32.gmra.mxu0 %v2143
        %v2262 = vpop.f32.mrf.mxu0
        %v2263 = vadd.f32 %v2184, %v2262
        %v2264 = vpop.f32.mrf.mxu0
        %2265 = vmatprep.mubr.f32.mxu0 %v2146
        %2266 = vmatmul.mubr.f32.gmra.mxu0 %v2145
        %v2267 = vpop.f32.mrf.mxu0
        %v2268 = vadd.f32 %v2184, %v2267
        %v2269 = vpop.f32.mrf.mxu0
        %2270 = vdwg.mxu0
        %v2271 = vadd.f32 %v1970, %v2253
        %v2272 = vadd.f32 %v1971, %v2258
        %v2273 = vadd.f32 %v1972, %v2263
        %v2274 = vadd.f32 %v1973, %v2268
        %v2275 = vld [vmem:[%s652] sm:$0x1]
        %v2276 = vld [vmem:[%s655] sm:$0x1]
        %2277 = vadd.xlane.f32.xlu0 %v2271
        %v2278 = vpop.xlane.xlu0 %2277
        %2279 = vadd.xlane.f32.xlu0 %v2272
        %v2280 = vpop.xlane.xlu0 %2279
        %2281 = vadd.xlane.f32.xlu0 %v2273
        %v2282 = vpop.xlane.xlu0 %2281
        %2283 = vadd.xlane.f32.xlu0 %v2274
        %v2284 = vpop.xlane.xlu0 %2283
        %v2285 = vmul.f32 %v2278, %v1909
        %v2286 = vmul.f32 %v2280, %v1909
        %v2287 = vmul.f32 %v2282, %v1909
        %v2288 = vmul.f32 %v2284, %v1909
        %v2289 = vmul.f32 %v2271, %v2271
        %v2290 = vmul.f32 %v2272, %v2272
        %v2291 = vmul.f32 %v2273, %v2273
        %v2292 = vmul.f32 %v2274, %v2274
        %2293 = vadd.xlane.f32.xlu0 %v2289
        %v2294 = vpop.xlane.xlu0 %2293
        %2295 = vadd.xlane.f32.xlu0 %v2290
        %v2296 = vpop.xlane.xlu0 %2295
        %2297 = vadd.xlane.f32.xlu0 %v2291
        %v2298 = vpop.xlane.xlu0 %2297
        %2299 = vadd.xlane.f32.xlu0 %v2292
        %v2300 = vpop.xlane.xlu0 %2299
        %v2301 = vmul.f32 %v2294, %v1909
        %v2302 = vmul.f32 %v2296, %v1909
        %v2303 = vmul.f32 %v2298, %v1909
        %v2304 = vmul.f32 %v2300, %v1909
        %v2305 = vmul.f32 %v2285, %v2285
        %v2306 = vmul.f32 %v2286, %v2286
        %v2307 = vmul.f32 %v2287, %v2287
        %v2308 = vmul.f32 %v2288, %v2288
        %v2309 = vsub.f32 %v2301, %v2305
        %v2310 = vsub.f32 %v2302, %v2306
        %v2311 = vsub.f32 %v2303, %v2307
        %v2312 = vsub.f32 %v2304, %v2308
        %v2313 = vsub.f32 %v2271, %v2285
        %v2314 = vsub.f32 %v2272, %v2286
        %v2315 = vsub.f32 %v2273, %v2287
        %v2316 = vsub.f32 %v2274, %v2288
        %v2317 = vadd.f32 %v2309, 1e-05
        %v2318 = vadd.f32 %v2310, 1e-05
        %v2319 = vadd.f32 %v2311, 1e-05
        %v2320 = vadd.f32 %v2312, 1e-05
        %v2321 = vrsqrt.pop %v2317
        %v2322 = vrsqrt.pop %v2318
        %v2323 = vrsqrt.pop %v2319
        %v2324 = vrsqrt.pop %v2320
        %v2325 = vmul.f32 %v2313, %v2321
        %v2326 = vmul.f32 %v2314, %v2322
        %v2327 = vmul.f32 %v2315, %v2323
        %v2328 = vmul.f32 %v2316, %v2324
        %v2330 = vlaneseq
        %v2331 = vshrl.u32 %v2330, 7
        %v2332 = vsub.s32 0, %v2331
        %v2333 = vrot.slane %v2275, %v2332
        %v2335 = vmul.f32 %v2325, %v2333
        %v2336 = vmul.f32 %v2326, %v2333
        %v2337 = vmul.f32 %v2327, %v2333
        %v2338 = vmul.f32 %v2328, %v2333
        %v2340 = vlaneseq
        %v2341 = vshrl.u32 %v2340, 7
        %v2342 = vsub.s32 0, %v2341
        %v2343 = vrot.slane %v2276, %v2342
        %v2345 = vadd.f32 %v2335, %v2343
        %v2346 = vadd.f32 %v2336, %v2343
        %v2347 = vadd.f32 %v2337, %v2343
        %v2348 = vadd.f32 %v2338, %v2343
        %2349 = vst [vmem:[#allocation2] sm:$0xff] %v2345
        %2350 = vst [vmem:[#allocation2 + $0x8] sm:$0xff] %v2346
        %2351 = vst [vmem:[#allocation2 + $0x10] sm:$0xff] %v2347
        %2352 = vst [vmem:[#allocation2 + $0x18] sm:$0xff] %v2348
        %p2353 = scmp.eq.s32.totalorder %s38, 1
        // Predicated region
        $region93: #{tpu_custom_call.1} parent=63 // pred_check
          %p2354 = pneg %p2353
        $region94: #{tpu_custom_call.1} parent=63 // pred_check_branch
          %2356 = sbr.rel (%p2354) target = $region96
        $region95: #{tpu_custom_call.1} parent=63 // pred_region
          %v2357 = vld [vmem:[#allocation2] sm:$0xff]
          %v2358 = vld [vmem:[#allocation2 + $0x8] sm:$0xff]
          %v2359 = vld [vmem:[#allocation2 + $0x10] sm:$0xff]
          %v2360 = vld [vmem:[#allocation2 + $0x18] sm:$0xff]
          %2361 = vst [vmem:[#allocation14] sm:$0xff] %v2357
          %2362 = vst [vmem:[#allocation14 + $0x8] sm:$0xff] %v2358
          %2363 = vst [vmem:[#allocation14 + $0x10] sm:$0xff] %v2359
          %2364 = vst [vmem:[#allocation14 + $0x18] sm:$0xff] %v2360
        $region96: #{tpu_custom_call.1} parent=63 // pred_fallthru
          _
        // Predicated region
        $region97: #{tpu_custom_call.1} parent=63 // pred_check
          %p2365 = pneg %p349
        $region98: #{tpu_custom_call.1} parent=63 // pred_check_branch
          %2367 = sbr.rel (%p2365) target = $region100
        $region99: #{tpu_custom_call.1} parent=63 // pred_region
          %s2368 = smul.u32 2, %s37
          %s2370 = ssub.s32 512, 512
          %2371 = vsyncadd [#allocation5], %s2370
          %s2372 = smul.addr %s2368, 2
          %s2373 = smul.addr %s2372, 128
          %s2374 = scalar_lea.hbm %s11, %s2373
          %s2375 = sshll.u32 [#allocation14], 4
          %s2376 = int_to_ptr.vmem [resolvable:$true] %s2375
          %2381 = dma.vmem_to_hbm [thread:$0]  %s2376, 512, %s2374, [#allocation5], 128, 128, 8
        $region100: #{tpu_custom_call.1} parent=63 // pred_fallthru
          _
        // Predicated region
        $region101: #{tpu_custom_call.1} parent=63 // pred_check
          %p2382 = pneg %p349
        $region102: #{tpu_custom_call.1} parent=63 // pred_check_branch
          %2384 = sbr.rel (%p2382) target = $region104
        $region103: #{tpu_custom_call.1} parent=63 // pred_region
          %2385 = dma.done [#allocation5], 512
        $region104: #{tpu_custom_call.1} parent=63 // pred_fallthru
          _
      $region64: #{tpu_custom_call.1} parent=5 // pred_fallthru
        _
      %p2386 = scmp.le.s32.totalorder 2, %s28
      // Predicated region
      $region105: #{tpu_custom_call.1} parent=5 // pred_check
        %p2387 = pneg %p2386
      $region106: #{tpu_custom_call.1} parent=5 // pred_check_branch
        %2389 = sbr.rel (%p2387) target = $region108
      $region107: #{tpu_custom_call.1} parent=5 // pred_region
        %s2390 = ssub.s32 %s28, 2
      $region108: #{tpu_custom_call.1} parent=5 // pred_fallthru
        _
    $region6: #{tpu_custom_call.1} parent=1 // loop_footer
      %s32 = sadd.s32 1, %s28
    $region7: #{tpu_custom_call.1} parent=1 // loop_footer_branch
      %27 = sbr.rel target = $region3
    $region8: #{tpu_custom_call.1} parent=1 // loop_exit
      _
    %2391 = vsyncpa [#allocation4], 1
    %s2392 = scalar_lea.sflag [#allocation4], 1
    %2393 = vsyncpa %s2392, 1
    %2394 = vsyncpa [#allocation7], 1
    %s2395 = scalar_lea.sflag [#allocation7], 1
    %2396 = vsyncpa %s2395, 1
    %2397 = vsyncpa [#allocation10], 1
    %s2398 = scalar_lea.sflag [#allocation10], 1
    %2399 = vsyncpa %s2398, 1
    %2400 = vsyncpa [#allocation13], 1
    %s2401 = scalar_lea.sflag [#allocation13], 1
    %2402 = vsyncpa %s2401, 1
    %2403 = vsyncpa [#allocation5], 1
    %s2404 = scalar_lea.sflag [#allocation5], 1
    %2405 = vsyncpa %s2404, 1

</llo_original>
